<compile_context>
chip_gen: v5e
topology: v5e:2x2
jax: 0.10.0
libtpu: 0.0.40
codegen_flags: <defaults>
</compile_context>

<pallas_src>
import functools

import jax
import jax.numpy as jnp
from jax import lax
from jax.experimental import pallas as pl
from jax.experimental.pallas import tpu as pltpu

HP = 128        # lane-aligned conv-channel / GRU-hidden width (100 -> 128)
POOL = 4        # MaxPool1d(4, stride=4)
B_TILE = 8      # batch rows per grid step (f32 sublane multiple)


# ----------------------------------------------------------------------------
# Fused kernel: conv (block-diag im2col) + pool + concat + pool + GRU + max +
# output Linear.  One grid step handles B_TILE batch rows.
# ----------------------------------------------------------------------------
def fused_kernel(lhs_ref, cw_ref, cb_ref, wih_ref, bih_ref, whh_ref, bhh_ref,
                 wout_ref, bout_ref, o_ref, gi_ref, *,
                 conv_cfg, t_steps, hp, pool, b_tile):
    nb = len(conv_cfg)
    l_out_max = lhs_ref.shape[1] // b_tile

    # ---- Phase 1: all three Conv1d branches as ONE block-diagonal matmul.
    # lhs rows are (time-major, batch-minor); result lanes: branch g at
    # [g*hp, (g+1)*hp).  Accumulate in f32, bias add in f32.
    acc = jnp.dot(lhs_ref[0], cw_ref[...],
                  preferred_element_type=jnp.float32) + cb_ref[...]
    acc3 = acc.reshape(l_out_max, b_tile, nb * hp)          # leading-dim split

    # Per-branch MaxPool1d(4,4) (floor), concat branches along time, pool again.
    pooled = []
    for g, (_, _, _, p_out) in enumerate(conv_cfg):
        br = acc3[:p_out * pool, :, g * hp:(g + 1) * hp]    # (p*4, bt, hp)
        pooled.append(jnp.max(br.reshape(p_out, pool, b_tile, hp), axis=1))
    cc = jnp.concatenate(pooled, axis=0)                    # (sum_p, bt, hp)
    seq = jnp.max(cc[:t_steps * pool].reshape(t_steps, pool, b_tile, hp),
                  axis=1)                                   # (T, bt, hp)

    # GRU input projections for ALL timesteps in one matmul; slab-store so the
    # scratch is lane/sublane dense and read back as full (bt, 3hp) tiles.
    gi = jnp.dot(seq.reshape(t_steps * b_tile, hp).astype(wih_ref.dtype),
                 wih_ref[...], preferred_element_type=jnp.float32) + bih_ref[...]
    gi_ref[...] = gi.reshape(t_steps, b_tile, 3 * hp)

    # ---- Phase 2: GRU recurrence (latency bound) + running max over time.
    whh = whh_ref[...]
    bhh = bhh_ref[...]
    h0 = jnp.zeros((b_tile, hp), jnp.float32)
    hmax0 = jnp.full((b_tile, hp), -jnp.inf, jnp.float32)

    def step(t, carry):
        h, hmax = carry
        g = gi_ref[t]                                       # (bt, 3hp) f32
        gh = jnp.dot(h.astype(whh.dtype), whh,
                     preferred_element_type=jnp.float32) + bhh
        r = jax.nn.sigmoid(g[:, :hp] + gh[:, :hp])
        z = jax.nn.sigmoid(g[:, hp:2 * hp] + gh[:, hp:2 * hp])
        n = jnp.tanh(g[:, 2 * hp:] + r * gh[:, 2 * hp:])
        h_new = (1.0 - z) * n + z * h
        return h_new, jnp.maximum(hmax, h_new)

    _, hmax = lax.fori_loop(0, t_steps, step, (h0, hmax0),
                            unroll=min(8, t_steps))

    # ---- Phase 3: output Linear, lane-padded to 128 classes (dense store).
    logits = jnp.dot(hmax.astype(wout_ref.dtype), wout_ref[...],
                     preferred_element_type=jnp.float32) + bout_ref[...]
    o_ref[...] = logits.astype(o_ref.dtype)


# ----------------------------------------------------------------------------
# Wrapper: embedding lookup, im2col + weight packing (XLA), one pallas_call.
# ----------------------------------------------------------------------------
def cnn_gru_forward(input_ids, p, *, mxu_dtype=jnp.bfloat16):
    f32 = jnp.float32
    # Embedding lookup (Dropout2d / Dropout are identity in eval mode).
    # TODO(synk): for production vocab/L, gather embedding rows inside the
    # kernel (PrefetchScalarGridSpec + DMA from the HBM table) instead of
    # materializing the (B, L, E) activation in HBM.
    emb = jnp.take(p["emb"], input_ids, axis=0).astype(f32)      # (B, L, E)
    B, L, E = emb.shape

    # Pad batch to a sublane multiple so every vreg in the kernel is full.
    B_pad = ((B + B_TILE - 1) // B_TILE) * B_TILE
    n_bt = B_pad // B_TILE
    emb = jnp.pad(emb, ((0, B_pad - B), (0, 0), (0, 0)))
    x_pad = jnp.pad(emb, ((0, 0), (2, 2), (0, 0)))                # max conv pad = 2

    # Conv branch configs: (kernel, offset into x_pad, l_out, pooled len).
    conv_defs = ((p["w1"], p["b1"], 0), (p["w2"], p["b2"], 1), (p["w3"], p["b3"], 2))
    conv_cfg = []
    for w, _, pad in conv_defs:
        K = w.shape[2]
        l_out = L + 2 * pad - K + 1
        conv_cfg.append((K, 2 - pad, l_out, l_out // POOL))
    l_out_max = max(c[2] for c in conv_cfg)
    t_steps = sum(c[3] for c in conv_cfg) // POOL                 # GRU length
    assert t_steps >= 1, "sequence too short: pooled CNN output shorter than 4"

    # ---- im2col LHS (wrapper-side): windows for every branch, every batch row.
    # Rows within a batch tile are (time-major, batch-minor); lanes are the
    # concatenation of the three branches' K*E windows.
    wins = []
    for (K, off, _, _), (w, _, _) in zip(conv_cfg, conv_defs):
        wins.append(jnp.concatenate(
            [x_pad[:, off + k: off + k + l_out_max, :] for k in range(K)],
            axis=-1))
    lhs = jnp.concatenate(wins, axis=-1)                          # (B_pad, Lm, KE)
    KE = lhs.shape[-1]
    KE_pad = ((KE + 127) // 128) * 128
    lhs = jnp.pad(lhs, ((0, 0), (0, 0), (0, KE_pad - KE)))
    lhs = lhs.reshape(n_bt, B_TILE, l_out_max, KE_pad)
    lhs = jnp.transpose(lhs, (0, 2, 1, 3)).reshape(
        n_bt, l_out_max * B_TILE, KE_pad).astype(mxu_dtype)

    # ---- Block-diagonal conv weights (KE_pad, 3*HP) + bias (1, 3*HP).
    # Padded rows/cols are exactly zero -> padded lanes stay zero downstream.
    nb = len(conv_cfg)
    cw = jnp.zeros((KE_pad, nb * HP), f32)
    cb = jnp.zeros((1, nb * HP), f32)
    row = 0
    for g, ((K, _, _, _), (w, bias, _)) in enumerate(zip(conv_cfg, conv_defs)):
        Og = w.shape[0]
        assert Og <= HP
        w_r = jnp.transpose(w, (2, 1, 0)).reshape(K * E, Og)      # row = k*E + e
        cw = cw.at[row:row + K * E, g * HP:g * HP + Og].set(w_r)
        cb = cb.at[0, g * HP:g * HP + Og].set(bias)
        row += K * E
    cw = cw.astype(mxu_dtype)

    # ---- GRU / output weights, per-gate padded to lane width (zeros elsewhere).
    H = p["whh"].shape[1]
    assert H <= HP

    def pad_gates_mat(w):                       # (3H, in) -> (HP, 3HP)
        in_dim = w.shape[1]
        out = jnp.zeros((3 * HP, HP), f32)
        for g in range(3):
            out = out.at[g * HP:g * HP + H, :in_dim].set(w[g * H:(g + 1) * H, :])
        return out.T

    def pad_gates_vec(v):                       # (3H,) -> (1, 3HP)
        out = jnp.zeros((3 * HP,), f32)
        for g in range(3):
            out = out.at[g * HP:g * HP + H].set(v[g * H:(g + 1) * H])
        return out.reshape(1, 3 * HP)

    wih_t = pad_gates_mat(p["wih"]).astype(mxu_dtype)
    whh_t = pad_gates_mat(p["whh"]).astype(mxu_dtype)
    bih = pad_gates_vec(p["bih"])
    bhh = pad_gates_vec(p["bhh"])

    C = p["wout"].shape[0]
    wout_t = jnp.zeros((HP, HP), f32).at[:H, :C].set(p["wout"].T).astype(mxu_dtype)
    bout = jnp.zeros((1, HP), f32).at[0, :C].set(p["bout"])

    kern = functools.partial(fused_kernel, conv_cfg=tuple(conv_cfg),
                             t_steps=t_steps, hp=HP, pool=POOL, b_tile=B_TILE)

    def resident(*shape):                       # weight stays in VMEM across grid
        return pl.BlockSpec(shape, lambda i, _n=len(shape): (0,) * _n)

    out = pl.pallas_call(
        kern,
        out_shape=jax.ShapeDtypeStruct((B_pad, HP), f32),
        grid=(n_bt,),
        in_specs=[
            pl.BlockSpec((1, l_out_max * B_TILE, KE_pad), lambda i: (i, 0, 0)),
            resident(KE_pad, nb * HP),          # conv weights (block-diag)
            resident(1, nb * HP),               # conv bias
            resident(HP, 3 * HP),               # W_ih^T (per-gate padded)
            resident(1, 3 * HP),                # b_ih
            resident(HP, 3 * HP),               # W_hh^T
            resident(1, 3 * HP),                # b_hh
            resident(HP, HP),                   # W_out^T (lane padded)
            resident(1, HP),                    # b_out
        ],
        out_specs=pl.BlockSpec((B_TILE, HP), lambda i: (i, 0)),
        scratch_shapes=[pltpu.VMEM((t_steps, B_TILE, 3 * HP), f32)],
        compiler_params=pltpu.CompilerParams(
            dimension_semantics=("parallel",),
            vmem_limit_bytes=32 * 1024 * 1024),
    )(lhs, cw, cb, wih_t, bih, whh_t, bhh, wout_t, bout)

    return out[:B, :C]


# ----------------------------------------------------------------------------
# Pure-JAX f32 reference (mirrors the PyTorch forward semantics)
# ----------------------------------------------------------------------------
def reference_forward(input_ids, p):
    emb = p["emb"][input_ids]

    def conv(x, W, b, pad):
        xp = jnp.pad(x, ((0, 0), (pad, pad), (0, 0)))
        K = W.shape[2]
        Lout = xp.shape[1] - K + 1
        out = b[None, None, :]
        for k in range(K):
            out = out + jnp.einsum("ble,oe->blo", xp[:, k:k + Lout, :], W[:, :, k])
        return out

    def mpool(x, pool=4):
        P = x.shape[1] // pool
        return x[:, :P * pool].reshape(x.shape[0], P, pool, x.shape[2]).max(axis=2)

    c1 = mpool(conv(emb, p["w1"], p["b1"], 0))
    c2 = mpool(conv(emb, p["w2"], p["b2"], 1))
    c3 = mpool(conv(emb, p["w3"], p["b3"], 2))
    cc = mpool(jnp.concatenate([c1, c2, c3], axis=1))
    B, T, _ = cc.shape
    H = p["whh"].shape[1]
    h = jnp.zeros((B, H), jnp.float32)
    hs = []
    for t in range(T):
        xt = cc[:, t]
        gi = xt @ p["wih"].T + p["bih"]
        gh = h @ p["whh"].T + p["bhh"]
        r = jax.nn.sigmoid(gi[:, :H] + gh[:, :H])
        z = jax.nn.sigmoid(gi[:, H:2 * H] + gh[:, H:2 * H])
        n = jnp.tanh(gi[:, 2 * H:] + r * gh[:, 2 * H:])
        h = (1.0 - z) * n + z * h
        hs.append(h)
    hmax = jnp.max(jnp.stack(hs, axis=1), axis=1)
    return hmax @ p["wout"].T + p["bout"]


# ----------------------------------------------------------------------------
if __name__ == "__main__":
    B, L, E = 2, 16, 32
    VOCAB, HID, NUM_CLASSES = 50, 100, 3

    key = jax.random.PRNGKey(0)
    keys = jax.random.split(key, 16)

    def init(k, shape, scale=0.1):
        return (scale * jax.random.normal(k, shape)).astype(jnp.float32)

    params = {
        "emb":  init(keys[0], (VOCAB, E)),
        "w1":   init(keys[1], (100, E, 2)), "b1": init(keys[2], (100,)),
        "w2":   init(keys[3], (100, E, 3)), "b2": init(keys[4], (100,)),
        "w3":   init(keys[5], (100, E, 4)), "b3": init(keys[6], (100,)),
        "wih":  init(keys[7], (3 * HID, 100)), "whh": init(keys[8], (3 * HID, HID)),
        "bih":  init(keys[9], (3 * HID,)),     "bhh": init(keys[10], (3 * HID,)),
        "wout": init(keys[11], (NUM_CLASSES, HID)),
        "bout": init(keys[12], (NUM_CLASSES,)),
    }

    input_ids = jax.random.randint(keys[13], (B, L), 0, VOCAB)

    ref = reference_forward(input_ids, params)

    # Tight f32 validation path (all-f32 MXU operands).
    fwd_f32 = jax.jit(functools.partial(cnn_gru_forward, mxu_dtype=jnp.float32))
    logits_f32 = jax.block_until_ready(fwd_f32(input_ids, params))
    assert logits_f32.shape == (B, NUM_CLASSES), logits_f32.shape
    assert jnp.allclose(logits_f32, ref, atol=2e-4), (logits_f32, ref)

    # Production path: bf16 MXU operands, f32 accumulation / gate math.
    fwd_bf16 = jax.jit(functools.partial(cnn_gru_forward, mxu_dtype=jnp.bfloat16))
    logits_bf16 = jax.block_until_ready(fwd_bf16(input_ids, params))
    assert logits_bf16.shape == (B, NUM_CLASSES), logits_bf16.shape
    assert jnp.allclose(logits_bf16, ref, atol=3e-2), (logits_bf16, ref)

    print("KERNEL_OK")
</pallas_src>

<mosaic_0001>
module attributes {stable_mosaic.version = 11 : i64} {
  func.func @fused_kernel(%arg0: i32, %arg1: memref<1x136x384xf32, #tpu.memory_space<vmem>>, %arg2: memref<384x384xf32, #tpu.memory_space<vmem>>, %arg3: memref<1x384xf32, #tpu.memory_space<vmem>>, %arg4: memref<128x384xf32, #tpu.memory_space<vmem>>, %arg5: memref<1x384xf32, #tpu.memory_space<vmem>>, %arg6: memref<128x384xf32, #tpu.memory_space<vmem>>, %arg7: memref<1x384xf32, #tpu.memory_space<vmem>>, %arg8: memref<128x128xf32, #tpu.memory_space<vmem>>, %arg9: memref<1x128xf32, #tpu.memory_space<vmem>>, %arg10: memref<8x128xf32, #tpu.memory_space<vmem>>, %arg11: memref<2x8x384xf32, #tpu.memory_space<vmem>>) attributes {dimension_semantics = [#tpu.dimension_semantics<parallel>], iteration_bounds = array<i64: 1>, scalar_prefetch = 0 : i64, scratch_operands = 1 : i64, tpu.core_type = #tpu.core_type<tc>, window_params = [{transform_indices = @transform_0, window_bounds = array<i64: 1, 136, 384>}, {pipeline_mode = #tpu.pipeline_mode<synchronous>, transform_indices = @transform_1, window_bounds = array<i64: 384, 384>}, {pipeline_mode = #tpu.pipeline_mode<synchronous>, transform_indices = @transform_2, window_bounds = array<i64: 1, 384>}, {pipeline_mode = #tpu.pipeline_mode<synchronous>, transform_indices = @transform_3, window_bounds = array<i64: 128, 384>}, {pipeline_mode = #tpu.pipeline_mode<synchronous>, transform_indices = @transform_4, window_bounds = array<i64: 1, 384>}, {pipeline_mode = #tpu.pipeline_mode<synchronous>, transform_indices = @transform_5, window_bounds = array<i64: 128, 384>}, {pipeline_mode = #tpu.pipeline_mode<synchronous>, transform_indices = @transform_6, window_bounds = array<i64: 1, 384>}, {pipeline_mode = #tpu.pipeline_mode<synchronous>, transform_indices = @transform_7, window_bounds = array<i64: 128, 128>}, {pipeline_mode = #tpu.pipeline_mode<synchronous>, transform_indices = @transform_8, window_bounds = array<i64: 1, 128>}, {transform_indices = @transform_9, window_bounds = array<i64: 8, 128>}]} {
    %c0 = arith.constant 0 : index
    %c0_0 = arith.constant 0 : index
    %c0_1 = arith.constant 0 : index
    %0 = vector.load %arg1[%c0, %c0_0, %c0_1] : memref<1x136x384xf32, #tpu.memory_space<vmem>>, vector<1x136x384xf32>
    %1 = vector.shape_cast %0 : vector<1x136x384xf32> to vector<136x384xf32>
    %c0_2 = arith.constant 0 : index
    %c0_3 = arith.constant 0 : index
    %2 = vector.load %arg2[%c0_2, %c0_3] : memref<384x384xf32, #tpu.memory_space<vmem>>, vector<384x384xf32>
    %cst = arith.constant dense<0.000000e+00> : vector<136x384xf32>
    %3 = tpu.matmul %1, %2, %cst {dimension_numbers = #tpu.dot_dimension_numbers<[1], [0], [0], [1], [0, 0, 1, 1], [], []>} : vector<136x384xf32>, vector<384x384xf32>, vector<136x384xf32> -> vector<136x384xf32>
    %c0_4 = arith.constant 0 : index
    %c0_5 = arith.constant 0 : index
    %4 = vector.load %arg3[%c0_4, %c0_5] : memref<1x384xf32, #tpu.memory_space<vmem>>, vector<1x384xf32>
    %5 = vector.broadcast %4 : vector<1x384xf32> to vector<136x384xf32>
    %6 = arith.addf %3, %5 : vector<136x384xf32>
    %7 = vector.shape_cast %6 : vector<136x384xf32> to vector<17x8x384xf32>
    %8 = vector.extract_strided_slice %7 {offsets = [0, 0, 0], sizes = [12, 8, 128], strides = [1, 1, 1]} : vector<17x8x384xf32> to vector<12x8x128xf32>
    %9 = vector.shape_cast %8 : vector<12x8x128xf32> to vector<3x4x8x128xf32>
    %cst_6 = arith.constant dense<0xFF800000> : vector<3x8x128xf32>
    %10 = vector.multi_reduction <maximumf>, %9, %cst_6 [1] : vector<3x4x8x128xf32> to vector<3x8x128xf32>
    %11 = vector.extract_strided_slice %7 {offsets = [0, 0, 128], sizes = [16, 8, 128], strides = [1, 1, 1]} : vector<17x8x384xf32> to vector<16x8x128xf32>
    %12 = vector.shape_cast %11 : vector<16x8x128xf32> to vector<4x4x8x128xf32>
    %cst_7 = arith.constant dense<0xFF800000> : vector<4x8x128xf32>
    %13 = vector.multi_reduction <maximumf>, %12, %cst_7 [1] : vector<4x4x8x128xf32> to vector<4x8x128xf32>
    %14 = vector.extract_strided_slice %7 {offsets = [0, 0, 256], sizes = [16, 8, 128], strides = [1, 1, 1]} : vector<17x8x384xf32> to vector<16x8x128xf32>
    %15 = vector.shape_cast %14 : vector<16x8x128xf32> to vector<4x4x8x128xf32>
    %cst_8 = arith.constant dense<0xFF800000> : vector<4x8x128xf32>
    %16 = vector.multi_reduction <maximumf>, %15, %cst_8 [1] : vector<4x4x8x128xf32> to vector<4x8x128xf32>
    %17 = tpu.concatenate %10, %13, %16 in 0 : vector<3x8x128xf32>, vector<4x8x128xf32>, vector<4x8x128xf32> -> vector<11x8x128xf32>
    %18 = vector.extract_strided_slice %17 {offsets = [0, 0, 0], sizes = [8, 8, 128], strides = [1, 1, 1]} : vector<11x8x128xf32> to vector<8x8x128xf32>
    %19 = vector.shape_cast %18 : vector<8x8x128xf32> to vector<2x4x8x128xf32>
    %cst_9 = arith.constant dense<0xFF800000> : vector<2x8x128xf32>
    %20 = vector.multi_reduction <maximumf>, %19, %cst_9 [1] : vector<2x4x8x128xf32> to vector<2x8x128xf32>
    %21 = vector.shape_cast %20 : vector<2x8x128xf32> to vector<16x128xf32>
    %c0_10 = arith.constant 0 : index
    %c0_11 = arith.constant 0 : index
    %22 = vector.load %arg4[%c0_10, %c0_11] : memref<128x384xf32, #tpu.memory_space<vmem>>, vector<128x384xf32>
    %cst_12 = arith.constant dense<0.000000e+00> : vector<16x384xf32>
    %23 = tpu.matmul %21, %22, %cst_12 {dimension_numbers = #tpu.dot_dimension_numbers<[1], [0], [0], [1], [0, 0, 1, 1], [], []>} : vector<16x128xf32>, vector<128x384xf32>, vector<16x384xf32> -> vector<16x384xf32>
    %c0_13 = arith.constant 0 : index
    %c0_14 = arith.constant 0 : index
    %24 = vector.load %arg5[%c0_13, %c0_14] : memref<1x384xf32, #tpu.memory_space<vmem>>, vector<1x384xf32>
    %25 = vector.broadcast %24 : vector<1x384xf32> to vector<16x384xf32>
    %26 = arith.addf %23, %25 : vector<16x384xf32>
    %27 = vector.shape_cast %26 : vector<16x384xf32> to vector<2x8x384xf32>
    %c0_15 = arith.constant 0 : index
    %c0_16 = arith.constant 0 : index
    %c0_17 = arith.constant 0 : index
    %28 = vector.load %arg11[%c0_15, %c0_16, %c0_17] : memref<2x8x384xf32, #tpu.memory_space<vmem>>, vector<2x8x384xf32>
    tpu.vector_store %arg11[%c0_15, %c0_16, %c0_17], %27 {strides = array<i32>} : memref<2x8x384xf32, #tpu.memory_space<vmem>>, vector<2x8x384xf32>,
    %c0_18 = arith.constant 0 : index
    %c0_19 = arith.constant 0 : index
    %29 = vector.load %arg6[%c0_18, %c0_19] : memref<128x384xf32, #tpu.memory_space<vmem>>, vector<128x384xf32>
    %c0_20 = arith.constant 0 : index
    %c0_21 = arith.constant 0 : index
    %30 = vector.load %arg7[%c0_20, %c0_21] : memref<1x384xf32, #tpu.memory_space<vmem>>, vector<1x384xf32>
    %cst_22 = arith.constant 0.000000e+00 : f32
    %31 = vector.broadcast %cst_22 : f32 to vector<8x128xf32>
    %cst_23 = arith.constant 0xFF800000 : f32
    %32 = vector.broadcast %cst_23 : f32 to vector<8x128xf32>
    %c0_i32 = arith.constant 0 : i32
    %33 = arith.index_cast %c0_i32 : i32 to index
    %c0_24 = arith.constant 0 : index
    %c0_25 = arith.constant 0 : index
    %34 = vector.load %arg11[%33, %c0_24, %c0_25] : memref<2x8x384xf32, #tpu.memory_space<vmem>>, vector<1x8x384xf32>
    %35 = vector.shape_cast %34 : vector<1x8x384xf32> to vector<8x384xf32>
    %cst_26 = arith.constant dense<0.000000e+00> : vector<8x384xf32>
    %36 = tpu.matmul %31, %29, %cst_26 {dimension_numbers = #tpu.dot_dimension_numbers<[1], [0], [0], [1], [0, 0, 1, 1], [], []>} : vector<8x128xf32>, vector<128x384xf32>, vector<8x384xf32> -> vector<8x384xf32>
    %37 = vector.broadcast %30 : vector<1x384xf32> to vector<8x384xf32>
    %38 = arith.addf %36, %37 : vector<8x384xf32>
    %39 = vector.extract_strided_slice %35 {offsets = [0, 0], sizes = [8, 128], strides = [1, 1]} : vector<8x384xf32> to vector<8x128xf32>
    %40 = vector.extract_strided_slice %38 {offsets = [0, 0], sizes = [8, 128], strides = [1, 1]} : vector<8x384xf32> to vector<8x128xf32>
    %41 = arith.addf %39, %40 : vector<8x128xf32>
    %42 = arith.negf %41 : vector<8x128xf32>
    %43 = math.exp %42 : vector<8x128xf32>
    %cst_27 = arith.constant 1.000000e+00 : f32
    %44 = vector.broadcast %cst_27 : f32 to vector<8x128xf32>
    %45 = arith.addf %44, %43 : vector<8x128xf32>
    %46 = arith.divf %44, %45 : vector<8x128xf32>
    %47 = vector.extract_strided_slice %35 {offsets = [0, 128], sizes = [8, 128], strides = [1, 1]} : vector<8x384xf32> to vector<8x128xf32>
    %48 = vector.extract_strided_slice %38 {offsets = [0, 128], sizes = [8, 128], strides = [1, 1]} : vector<8x384xf32> to vector<8x128xf32>
    %49 = arith.addf %47, %48 : vector<8x128xf32>
    %50 = arith.negf %49 : vector<8x128xf32>
    %51 = math.exp %50 : vector<8x128xf32>
    %cst_28 = arith.constant 1.000000e+00 : f32
    %52 = vector.broadcast %cst_28 : f32 to vector<8x128xf32>
    %53 = arith.addf %52, %51 : vector<8x128xf32>
    %54 = arith.divf %52, %53 : vector<8x128xf32>
    %55 = vector.extract_strided_slice %35 {offsets = [0, 256], sizes = [8, 128], strides = [1, 1]} : vector<8x384xf32> to vector<8x128xf32>
    %56 = vector.extract_strided_slice %38 {offsets = [0, 256], sizes = [8, 128], strides = [1, 1]} : vector<8x384xf32> to vector<8x128xf32>
    %57 = arith.mulf %46, %56 : vector<8x128xf32>
    %58 = arith.addf %55, %57 : vector<8x128xf32>
    %59 = math.tanh %58 : vector<8x128xf32>
    %cst_29 = arith.constant 1.000000e+00 : f32
    %60 = vector.broadcast %cst_29 : f32 to vector<8x128xf32>
    %61 = arith.subf %60, %54 : vector<8x128xf32>
    %62 = arith.mulf %61, %59 : vector<8x128xf32>
    %63 = arith.mulf %54, %31 : vector<8x128xf32>
    %64 = arith.addf %62, %63 : vector<8x128xf32>
    %65 = arith.maximumf %32, %64 : vector<8x128xf32>
    %c1_i32 = arith.constant 1 : i32
    %66 = arith.index_cast %c1_i32 : i32 to index
    %c0_30 = arith.constant 0 : index
    %c0_31 = arith.constant 0 : index
    %67 = vector.load %arg11[%66, %c0_30, %c0_31] : memref<2x8x384xf32, #tpu.memory_space<vmem>>, vector<1x8x384xf32>
    %68 = vector.shape_cast %67 : vector<1x8x384xf32> to vector<8x384xf32>
    %cst_32 = arith.constant dense<0.000000e+00> : vector<8x384xf32>
    %69 = tpu.matmul %64, %29, %cst_32 {dimension_numbers = #tpu.dot_dimension_numbers<[1], [0], [0], [1], [0, 0, 1, 1], [], []>} : vector<8x128xf32>, vector<128x384xf32>, vector<8x384xf32> -> vector<8x384xf32>
    %70 = vector.broadcast %30 : vector<1x384xf32> to vector<8x384xf32>
    %71 = arith.addf %69, %70 : vector<8x384xf32>
    %72 = vector.extract_strided_slice %68 {offsets = [0, 0], sizes = [8, 128], strides = [1, 1]} : vector<8x384xf32> to vector<8x128xf32>
    %73 = vector.extract_strided_slice %71 {offsets = [0, 0], sizes = [8, 128], strides = [1, 1]} : vector<8x384xf32> to vector<8x128xf32>
    %74 = arith.addf %72, %73 : vector<8x128xf32>
    %75 = arith.negf %74 : vector<8x128xf32>
    %76 = math.exp %75 : vector<8x128xf32>
    %cst_33 = arith.constant 1.000000e+00 : f32
    %77 = vector.broadcast %cst_33 : f32 to vector<8x128xf32>
    %78 = arith.addf %77, %76 : vector<8x128xf32>
    %79 = arith.divf %77, %78 : vector<8x128xf32>
    %80 = vector.extract_strided_slice %68 {offsets = [0, 128], sizes = [8, 128], strides = [1, 1]} : vector<8x384xf32> to vector<8x128xf32>
    %81 = vector.extract_strided_slice %71 {offsets = [0, 128], sizes = [8, 128], strides = [1, 1]} : vector<8x384xf32> to vector<8x128xf32>
    %82 = arith.addf %80, %81 : vector<8x128xf32>
    %83 = arith.negf %82 : vector<8x128xf32>
    %84 = math.exp %83 : vector<8x128xf32>
    %cst_34 = arith.constant 1.000000e+00 : f32
    %85 = vector.broadcast %cst_34 : f32 to vector<8x128xf32>
    %86 = arith.addf %85, %84 : vector<8x128xf32>
    %87 = arith.divf %85, %86 : vector<8x128xf32>
    %88 = vector.extract_strided_slice %68 {offsets = [0, 256], sizes = [8, 128], strides = [1, 1]} : vector<8x384xf32> to vector<8x128xf32>
    %89 = vector.extract_strided_slice %71 {offsets = [0, 256], sizes = [8, 128], strides = [1, 1]} : vector<8x384xf32> to vector<8x128xf32>
    %90 = arith.mulf %79, %89 : vector<8x128xf32>
    %91 = arith.addf %88, %90 : vector<8x128xf32>
    %92 = math.tanh %91 : vector<8x128xf32>
    %cst_35 = arith.constant 1.000000e+00 : f32
    %93 = vector.broadcast %cst_35 : f32 to vector<8x128xf32>
    %94 = arith.subf %93, %87 : vector<8x128xf32>
    %95 = arith.mulf %94, %92 : vector<8x128xf32>
    %96 = arith.mulf %87, %64 : vector<8x128xf32>
    %97 = arith.addf %95, %96 : vector<8x128xf32>
    %98 = arith.maximumf %65, %97 : vector<8x128xf32>
    %c2_i32 = arith.constant 2 : i32
    %c0_36 = arith.constant 0 : index
    %c0_37 = arith.constant 0 : index
    %99 = vector.load %arg8[%c0_36, %c0_37] : memref<128x128xf32, #tpu.memory_space<vmem>>, vector<128x128xf32>
    %cst_38 = arith.constant dense<0.000000e+00> : vector<8x128xf32>
    %100 = tpu.matmul %98, %99, %cst_38 {dimension_numbers = #tpu.dot_dimension_numbers<[1], [0], [0], [1], [0, 0, 1, 1], [], []>} : vector<8x128xf32>, vector<128x128xf32>, vector<8x128xf32> -> vector<8x128xf32>
    %c0_39 = arith.constant 0 : index
    %c0_40 = arith.constant 0 : index
    %101 = vector.load %arg9[%c0_39, %c0_40] : memref<1x128xf32, #tpu.memory_space<vmem>>, vector<1x128xf32>
    %102 = vector.broadcast %101 : vector<1x128xf32> to vector<8x128xf32>
    %103 = arith.addf %100, %102 : vector<8x128xf32>
    %c0_41 = arith.constant 0 : index
    %c0_42 = arith.constant 0 : index
    %104 = vector.load %arg10[%c0_41, %c0_42] : memref<8x128xf32, #tpu.memory_space<vmem>>, vector<8x128xf32>
    tpu.vector_store %arg10[%c0_41, %c0_42], %103 {strides = array<i32>} : memref<8x128xf32, #tpu.memory_space<vmem>>, vector<8x128xf32>,
    return
  }
  func.func @transform_0(%arg0: i32) -> (i32, i32, i32) {
    %c0_i32 = arith.constant 0 : i32
    %c0_i32_0 = arith.constant 0 : i32
    %c0_i32_1 = arith.constant 0 : i32
    return %arg0, %c0_i32, %c0_i32_0 : i32, i32, i32
  }
  func.func @transform_1(%arg0: i32) -> (i32, i32) {
    %c0_i32 = arith.constant 0 : i32
    %c0_i32_0 = arith.constant 0 : i32
    %c0_i32_1 = arith.constant 0 : i32
    return %c0_i32, %c0_i32_0 : i32, i32
  }
  func.func @transform_2(%arg0: i32) -> (i32, i32) {
    %c0_i32 = arith.constant 0 : i32
    %c0_i32_0 = arith.constant 0 : i32
    %c0_i32_1 = arith.constant 0 : i32
    return %c0_i32, %c0_i32_0 : i32, i32
  }
  func.func @transform_3(%arg0: i32) -> (i32, i32) {
    %c0_i32 = arith.constant 0 : i32
    %c0_i32_0 = arith.constant 0 : i32
    %c0_i32_1 = arith.constant 0 : i32
    return %c0_i32, %c0_i32_0 : i32, i32
  }
  func.func @transform_4(%arg0: i32) -> (i32, i32) {
    %c0_i32 = arith.constant 0 : i32
    %c0_i32_0 = arith.constant 0 : i32
    %c0_i32_1 = arith.constant 0 : i32
    return %c0_i32, %c0_i32_0 : i32, i32
  }
  func.func @transform_5(%arg0: i32) -> (i32, i32) {
    %c0_i32 = arith.constant 0 : i32
    %c0_i32_0 = arith.constant 0 : i32
    %c0_i32_1 = arith.constant 0 : i32
    return %c0_i32, %c0_i32_0 : i32, i32
  }
  func.func @transform_6(%arg0: i32) -> (i32, i32) {
    %c0_i32 = arith.constant 0 : i32
    %c0_i32_0 = arith.constant 0 : i32
    %c0_i32_1 = arith.constant 0 : i32
    return %c0_i32, %c0_i32_0 : i32, i32
  }
  func.func @transform_7(%arg0: i32) -> (i32, i32) {
    %c0_i32 = arith.constant 0 : i32
    %c0_i32_0 = arith.constant 0 : i32
    %c0_i32_1 = arith.constant 0 : i32
    return %c0_i32, %c0_i32_0 : i32, i32
  }
  func.func @transform_8(%arg0: i32) -> (i32, i32) {
    %c0_i32 = arith.constant 0 : i32
    %c0_i32_0 = arith.constant 0 : i32
    %c0_i32_1 = arith.constant 0 : i32
    return %c0_i32, %c0_i32_0 : i32, i32
  }
  func.func @transform_9(%arg0: i32) -> (i32, i32) {
    %c0_i32 = arith.constant 0 : i32
    %c0_i32_0 = arith.constant 0 : i32
    return %arg0, %c0_i32 : i32, i32
  }
}

</mosaic_0001>

<llo_original>
// kernel: cnn_gru_forward.1
$region0: #{cnn_gru_forward.1}
  #allocation0 [shape = 'u32[]', space=smem, size = 0x4, offset = 0x4, fixed_abs, tag = 'smem constant byte address 0x4 - core index']
  #allocation1 [shape = 'u32[72,128]{1,0:T(1,128)}', space=vmem, size = 0x9000, scoped, tag = 'internal scratch']
  #allocation2 [shape = 'f32[2,8,384]{2,1,0:T(8,128)}', space=vmem, size = 0x6000, scoped, tag = 'scratch operand']
  %s0 = inlined_call_operand.vmem [shape: f32[1,136,384], index: 0, kind: input, shape index: {}]
  %s1 = inlined_call_operand.vmem [shape: f32[384,384], index: 1, kind: input, shape index: {}]
  %s2 = inlined_call_operand.vmem [shape: f32[1,384], index: 2, kind: input, shape index: {}]
  %s3 = inlined_call_operand.vmem [shape: f32[128,384], index: 3, kind: input, shape index: {}]
  %s4 = inlined_call_operand.vmem [shape: f32[1,384], index: 4, kind: input, shape index: {}]
  %s5 = inlined_call_operand.vmem [shape: f32[128,384], index: 5, kind: input, shape index: {}]
  %s6 = inlined_call_operand.vmem [shape: f32[1,384], index: 6, kind: input, shape index: {}]
  %s7 = inlined_call_operand.vmem [shape: f32[128,128], index: 7, kind: input, shape index: {}]
  %s8 = inlined_call_operand.vmem [shape: f32[1,128], index: 8, kind: input, shape index: {}]
  %s9 = inlined_call_operand.vmem [shape: f32[8,128], index: 9, kind: output, shape index: {}]
  %s10 = sld [smem:[#allocation0]]
  $region46: #{cnn_gru_forward.1} parent=0
    _
  %s12 = ssub.s32 1, %s10
  %s13 = scalar_select 0, %s12, %s10
  // Predicated region
  $region2: #{cnn_gru_forward.1} parent=0 // pred_check
    _
  $region3: #{cnn_gru_forward.1} parent=0 // pred_check_branch
    %15 = sbr.rel (0) target = $region5
  $region4: #{cnn_gru_forward.1} parent=0 // pred_region
    _
  $region5: #{cnn_gru_forward.1} parent=0 // pred_fallthru
    _
  // Predicated region
  $region6: #{cnn_gru_forward.1} parent=0 // pred_check
    _
  $region7: #{cnn_gru_forward.1} parent=0 // pred_check_branch
    %17 = sbr.rel (0) target = $region9
  $region8: #{cnn_gru_forward.1} parent=0 // pred_region
    _
  $region9: #{cnn_gru_forward.1} parent=0 // pred_fallthru
    _
  // Predicated region
  $region10: #{cnn_gru_forward.1} parent=0 // pred_check
    _
  $region11: #{cnn_gru_forward.1} parent=0 // pred_check_branch
    %19 = sbr.rel (0) target = $region13
  $region12: #{cnn_gru_forward.1} parent=0 // pred_region
    _
  $region13: #{cnn_gru_forward.1} parent=0 // pred_fallthru
    _
  // Predicated region
  $region14: #{cnn_gru_forward.1} parent=0 // pred_check
    _
  $region15: #{cnn_gru_forward.1} parent=0 // pred_check_branch
    %21 = sbr.rel (0) target = $region17
  $region16: #{cnn_gru_forward.1} parent=0 // pred_region
    _
  $region17: #{cnn_gru_forward.1} parent=0 // pred_fallthru
    _
  // Predicated region
  $region18: #{cnn_gru_forward.1} parent=0 // pred_check
    _
  $region19: #{cnn_gru_forward.1} parent=0 // pred_check_branch
    %23 = sbr.rel (0) target = $region21
  $region20: #{cnn_gru_forward.1} parent=0 // pred_region
    _
  $region21: #{cnn_gru_forward.1} parent=0 // pred_fallthru
    _
  // Predicated region
  $region22: #{cnn_gru_forward.1} parent=0 // pred_check
    _
  $region23: #{cnn_gru_forward.1} parent=0 // pred_check_branch
    %25 = sbr.rel (0) target = $region25
  $region24: #{cnn_gru_forward.1} parent=0 // pred_region
    _
  $region25: #{cnn_gru_forward.1} parent=0 // pred_fallthru
    _
  // Predicated region
  $region26: #{cnn_gru_forward.1} parent=0 // pred_check
    _
  $region27: #{cnn_gru_forward.1} parent=0 // pred_check_branch
    %27 = sbr.rel (0) target = $region29
  $region28: #{cnn_gru_forward.1} parent=0 // pred_region
    _
  $region29: #{cnn_gru_forward.1} parent=0 // pred_fallthru
    _
  // Predicated region
  $region30: #{cnn_gru_forward.1} parent=0 // pred_check
    _
  $region31: #{cnn_gru_forward.1} parent=0 // pred_check_branch
    %29 = sbr.rel (0) target = $region33
  $region32: #{cnn_gru_forward.1} parent=0 // pred_region
    _
  $region33: #{cnn_gru_forward.1} parent=0 // pred_fallthru
    _
  // Predicated region
  $region34: #{cnn_gru_forward.1} parent=0 // pred_check
    _
  $region35: #{cnn_gru_forward.1} parent=0 // pred_check_branch
    %31 = sbr.rel (0) target = $region37
  $region36: #{cnn_gru_forward.1} parent=0 // pred_region
    _
  $region37: #{cnn_gru_forward.1} parent=0 // pred_fallthru
    _
  %v32 = vld [vmem:[%s0] sm:$0xff]
  %v33 = vld [vmem:[%s0 + $0x8] sm:$0xff]
  %v34 = vld [vmem:[%s0 + $0x10] sm:$0xff]
  %v35 = vld [vmem:[%s0 + $0x18] sm:$0xff]
  %v36 = vld [vmem:[%s0 + $0x20] sm:$0xff]
  %v37 = vld [vmem:[%s0 + $0x28] sm:$0xff]
  %v38 = vld [vmem:[%s0 + $0x30] sm:$0xff]
  %v39 = vld [vmem:[%s0 + $0x38] sm:$0xff]
  %v40 = vld [vmem:[%s0 + $0x40] sm:$0xff]
  %v41 = vld [vmem:[%s0 + $0x48] sm:$0xff]
  %v42 = vld [vmem:[%s0 + $0x50] sm:$0xff]
  %v43 = vld [vmem:[%s0 + $0x58] sm:$0xff]
  %v44 = vld [vmem:[%s0 + $0x60] sm:$0xff]
  %v45 = vld [vmem:[%s0 + $0x68] sm:$0xff]
  %v46 = vld [vmem:[%s0 + $0x70] sm:$0xff]
  %v47 = vld [vmem:[%s0 + $0x78] sm:$0xff]
  %v48 = vld [vmem:[%s0 + $0x80] sm:$0xff]
  %v49 = vld [vmem:[%s0 + $0x88] sm:$0xff]
  %v50 = vld [vmem:[%s0 + $0x90] sm:$0xff]
  %v51 = vld [vmem:[%s0 + $0x98] sm:$0xff]
  %v52 = vld [vmem:[%s0 + $0xa0] sm:$0xff]
  %v53 = vld [vmem:[%s0 + $0xa8] sm:$0xff]
  %v54 = vld [vmem:[%s0 + $0xb0] sm:$0xff]
  %v55 = vld [vmem:[%s0 + $0xb8] sm:$0xff]
  %v56 = vld [vmem:[%s0 + $0xc0] sm:$0xff]
  %v57 = vld [vmem:[%s0 + $0xc8] sm:$0xff]
  %v58 = vld [vmem:[%s0 + $0xd0] sm:$0xff]
  %v59 = vld [vmem:[%s0 + $0xd8] sm:$0xff]
  %v60 = vld [vmem:[%s0 + $0xe0] sm:$0xff]
  %v61 = vld [vmem:[%s0 + $0xe8] sm:$0xff]
  %v62 = vld [vmem:[%s0 + $0xf0] sm:$0xff]
  %v63 = vld [vmem:[%s0 + $0xf8] sm:$0xff]
  %v64 = vld [vmem:[%s0 + $0x100] sm:$0xff]
  %v65 = vld [vmem:[%s0 + $0x108] sm:$0xff]
  %v66 = vld [vmem:[%s0 + $0x110] sm:$0xff]
  %v67 = vld [vmem:[%s0 + $0x118] sm:$0xff]
  %v68 = vld [vmem:[%s0 + $0x120] sm:$0xff]
  %v69 = vld [vmem:[%s0 + $0x128] sm:$0xff]
  %v70 = vld [vmem:[%s0 + $0x130] sm:$0xff]
  %v71 = vld [vmem:[%s0 + $0x138] sm:$0xff]
  %v72 = vld [vmem:[%s0 + $0x140] sm:$0xff]
  %v73 = vld [vmem:[%s0 + $0x148] sm:$0xff]
  %v74 = vld [vmem:[%s0 + $0x150] sm:$0xff]
  %v75 = vld [vmem:[%s0 + $0x158] sm:$0xff]
  %v76 = vld [vmem:[%s0 + $0x160] sm:$0xff]
  %v77 = vld [vmem:[%s0 + $0x168] sm:$0xff]
  %v78 = vld [vmem:[%s0 + $0x170] sm:$0xff]
  %v79 = vld [vmem:[%s0 + $0x178] sm:$0xff]
  %v80 = vld [vmem:[%s0 + $0x180] sm:$0xff]
  %v81 = vld [vmem:[%s0 + $0x188] sm:$0xff]
  %v82 = vld [vmem:[%s0 + $0x190] sm:$0xff]
  %v83 = vld [vmem:[%s1] sm:$0xff]
  %v84 = vld [vmem:[%s1 + $0x8] sm:$0xff]
  %v85 = vld [vmem:[%s1 + $0x10] sm:$0xff]
  %v86 = vld [vmem:[%s1 + $0x18] sm:$0xff]
  %v87 = vld [vmem:[%s1 + $0x20] sm:$0xff]
  %v88 = vld [vmem:[%s1 + $0x28] sm:$0xff]
  %v89 = vld [vmem:[%s1 + $0x30] sm:$0xff]
  %v90 = vld [vmem:[%s1 + $0x38] sm:$0xff]
  %v91 = vld [vmem:[%s1 + $0x40] sm:$0xff]
  %v92 = vld [vmem:[%s1 + $0x48] sm:$0xff]
  %v93 = vld [vmem:[%s1 + $0x50] sm:$0xff]
  %v94 = vld [vmem:[%s1 + $0x58] sm:$0xff]
  %v95 = vld [vmem:[%s1 + $0x60] sm:$0xff]
  %v96 = vld [vmem:[%s1 + $0x68] sm:$0xff]
  %v97 = vld [vmem:[%s1 + $0x70] sm:$0xff]
  %v98 = vld [vmem:[%s1 + $0x78] sm:$0xff]
  %v99 = vld [vmem:[%s1 + $0x80] sm:$0xff]
  %v100 = vld [vmem:[%s1 + $0x88] sm:$0xff]
  %v101 = vld [vmem:[%s1 + $0x90] sm:$0xff]
  %v102 = vld [vmem:[%s1 + $0x98] sm:$0xff]
  %v103 = vld [vmem:[%s1 + $0xa0] sm:$0xff]
  %v104 = vld [vmem:[%s1 + $0xa8] sm:$0xff]
  %v105 = vld [vmem:[%s1 + $0xb0] sm:$0xff]
  %v106 = vld [vmem:[%s1 + $0xb8] sm:$0xff]
  %v107 = vld [vmem:[%s1 + $0xc0] sm:$0xff]
  %v108 = vld [vmem:[%s1 + $0xc8] sm:$0xff]
  %v109 = vld [vmem:[%s1 + $0xd0] sm:$0xff]
  %v110 = vld [vmem:[%s1 + $0xd8] sm:$0xff]
  %v111 = vld [vmem:[%s1 + $0xe0] sm:$0xff]
  %v112 = vld [vmem:[%s1 + $0xe8] sm:$0xff]
  %v113 = vld [vmem:[%s1 + $0xf0] sm:$0xff]
  %v114 = vld [vmem:[%s1 + $0xf8] sm:$0xff]
  %v115 = vld [vmem:[%s1 + $0x100] sm:$0xff]
  %v116 = vld [vmem:[%s1 + $0x108] sm:$0xff]
  %v117 = vld [vmem:[%s1 + $0x110] sm:$0xff]
  %v118 = vld [vmem:[%s1 + $0x118] sm:$0xff]
  %v119 = vld [vmem:[%s1 + $0x120] sm:$0xff]
  %v120 = vld [vmem:[%s1 + $0x128] sm:$0xff]
  %v121 = vld [vmem:[%s1 + $0x130] sm:$0xff]
  %v122 = vld [vmem:[%s1 + $0x138] sm:$0xff]
  %v123 = vld [vmem:[%s1 + $0x140] sm:$0xff]
  %v124 = vld [vmem:[%s1 + $0x148] sm:$0xff]
  %v125 = vld [vmem:[%s1 + $0x150] sm:$0xff]
  %v126 = vld [vmem:[%s1 + $0x158] sm:$0xff]
  %v127 = vld [vmem:[%s1 + $0x160] sm:$0xff]
  %v128 = vld [vmem:[%s1 + $0x168] sm:$0xff]
  %v129 = vld [vmem:[%s1 + $0x170] sm:$0xff]
  %v130 = vld [vmem:[%s1 + $0x178] sm:$0xff]
  %v131 = vld [vmem:[%s1 + $0x180] sm:$0xff]
  %v132 = vld [vmem:[%s1 + $0x188] sm:$0xff]
  %v133 = vld [vmem:[%s1 + $0x190] sm:$0xff]
  %v134 = vld [vmem:[%s1 + $0x198] sm:$0xff]
  %v135 = vld [vmem:[%s1 + $0x1a0] sm:$0xff]
  %v136 = vld [vmem:[%s1 + $0x1a8] sm:$0xff]
  %v137 = vld [vmem:[%s1 + $0x1b0] sm:$0xff]
  %v138 = vld [vmem:[%s1 + $0x1b8] sm:$0xff]
  %v139 = vld [vmem:[%s1 + $0x1c0] sm:$0xff]
  %v140 = vld [vmem:[%s1 + $0x1c8] sm:$0xff]
  %v141 = vld [vmem:[%s1 + $0x1d0] sm:$0xff]
  %v142 = vld [vmem:[%s1 + $0x1d8] sm:$0xff]
  %v143 = vld [vmem:[%s1 + $0x1e0] sm:$0xff]
  %v144 = vld [vmem:[%s1 + $0x1e8] sm:$0xff]
  %v145 = vld [vmem:[%s1 + $0x1f0] sm:$0xff]
  %v146 = vld [vmem:[%s1 + $0x1f8] sm:$0xff]
  %v147 = vld [vmem:[%s1 + $0x200] sm:$0xff]
  %v148 = vld [vmem:[%s1 + $0x208] sm:$0xff]
  %v149 = vld [vmem:[%s1 + $0x210] sm:$0xff]
  %v150 = vld [vmem:[%s1 + $0x218] sm:$0xff]
  %v151 = vld [vmem:[%s1 + $0x220] sm:$0xff]
  %v152 = vld [vmem:[%s1 + $0x228] sm:$0xff]
  %v153 = vld [vmem:[%s1 + $0x230] sm:$0xff]
  %v154 = vld [vmem:[%s1 + $0x238] sm:$0xff]
  %v155 = vld [vmem:[%s1 + $0x240] sm:$0xff]
  %v156 = vld [vmem:[%s1 + $0x248] sm:$0xff]
  %v157 = vld [vmem:[%s1 + $0x250] sm:$0xff]
  %v158 = vld [vmem:[%s1 + $0x258] sm:$0xff]
  %v159 = vld [vmem:[%s1 + $0x260] sm:$0xff]
  %v160 = vld [vmem:[%s1 + $0x268] sm:$0xff]
  %v161 = vld [vmem:[%s1 + $0x270] sm:$0xff]
  %v162 = vld [vmem:[%s1 + $0x278] sm:$0xff]
  %v163 = vld [vmem:[%s1 + $0x280] sm:$0xff]
  %v164 = vld [vmem:[%s1 + $0x288] sm:$0xff]
  %v165 = vld [vmem:[%s1 + $0x290] sm:$0xff]
  %v166 = vld [vmem:[%s1 + $0x298] sm:$0xff]
  %v167 = vld [vmem:[%s1 + $0x2a0] sm:$0xff]
  %v168 = vld [vmem:[%s1 + $0x2a8] sm:$0xff]
  %v169 = vld [vmem:[%s1 + $0x2b0] sm:$0xff]
  %v170 = vld [vmem:[%s1 + $0x2b8] sm:$0xff]
  %v171 = vld [vmem:[%s1 + $0x2c0] sm:$0xff]
  %v172 = vld [vmem:[%s1 + $0x2c8] sm:$0xff]
  %v173 = vld [vmem:[%s1 + $0x2d0] sm:$0xff]
  %v174 = vld [vmem:[%s1 + $0x2d8] sm:$0xff]
  %v175 = vld [vmem:[%s1 + $0x2e0] sm:$0xff]
  %v176 = vld [vmem:[%s1 + $0x2e8] sm:$0xff]
  %v177 = vld [vmem:[%s1 + $0x2f0] sm:$0xff]
  %v178 = vld [vmem:[%s1 + $0x2f8] sm:$0xff]
  %v179 = vld [vmem:[%s1 + $0x300] sm:$0xff]
  %v180 = vld [vmem:[%s1 + $0x308] sm:$0xff]
  %v181 = vld [vmem:[%s1 + $0x310] sm:$0xff]
  %v182 = vld [vmem:[%s1 + $0x318] sm:$0xff]
  %v183 = vld [vmem:[%s1 + $0x320] sm:$0xff]
  %v184 = vld [vmem:[%s1 + $0x328] sm:$0xff]
  %v185 = vld [vmem:[%s1 + $0x330] sm:$0xff]
  %v186 = vld [vmem:[%s1 + $0x338] sm:$0xff]
  %v187 = vld [vmem:[%s1 + $0x340] sm:$0xff]
  %v188 = vld [vmem:[%s1 + $0x348] sm:$0xff]
  %v189 = vld [vmem:[%s1 + $0x350] sm:$0xff]
  %v190 = vld [vmem:[%s1 + $0x358] sm:$0xff]
  %v191 = vld [vmem:[%s1 + $0x360] sm:$0xff]
  %v192 = vld [vmem:[%s1 + $0x368] sm:$0xff]
  %v193 = vld [vmem:[%s1 + $0x370] sm:$0xff]
  %v194 = vld [vmem:[%s1 + $0x378] sm:$0xff]
  %v195 = vld [vmem:[%s1 + $0x380] sm:$0xff]
  %v196 = vld [vmem:[%s1 + $0x388] sm:$0xff]
  %v197 = vld [vmem:[%s1 + $0x390] sm:$0xff]
  %v198 = vld [vmem:[%s1 + $0x398] sm:$0xff]
  %v199 = vld [vmem:[%s1 + $0x3a0] sm:$0xff]
  %v200 = vld [vmem:[%s1 + $0x3a8] sm:$0xff]
  %v201 = vld [vmem:[%s1 + $0x3b0] sm:$0xff]
  %v202 = vld [vmem:[%s1 + $0x3b8] sm:$0xff]
  %v203 = vld [vmem:[%s1 + $0x3c0] sm:$0xff]
  %v204 = vld [vmem:[%s1 + $0x3c8] sm:$0xff]
  %v205 = vld [vmem:[%s1 + $0x3d0] sm:$0xff]
  %v206 = vld [vmem:[%s1 + $0x3d8] sm:$0xff]
  %v207 = vld [vmem:[%s1 + $0x3e0] sm:$0xff]
  %v208 = vld [vmem:[%s1 + $0x3e8] sm:$0xff]
  %v209 = vld [vmem:[%s1 + $0x3f0] sm:$0xff]
  %v210 = vld [vmem:[%s1 + $0x3f8] sm:$0xff]
  %v211 = vld [vmem:[%s1 + $0x400] sm:$0xff]
  %v212 = vld [vmem:[%s1 + $0x408] sm:$0xff]
  %v213 = vld [vmem:[%s1 + $0x410] sm:$0xff]
  %v214 = vld [vmem:[%s1 + $0x418] sm:$0xff]
  %v215 = vld [vmem:[%s1 + $0x420] sm:$0xff]
  %v216 = vld [vmem:[%s1 + $0x428] sm:$0xff]
  %v217 = vld [vmem:[%s1 + $0x430] sm:$0xff]
  %v218 = vld [vmem:[%s1 + $0x438] sm:$0xff]
  %v219 = vld [vmem:[%s1 + $0x440] sm:$0xff]
  %v220 = vld [vmem:[%s1 + $0x448] sm:$0xff]
  %v221 = vld [vmem:[%s1 + $0x450] sm:$0xff]
  %v222 = vld [vmem:[%s1 + $0x458] sm:$0xff]
  %v223 = vld [vmem:[%s1 + $0x460] sm:$0xff]
  %v224 = vld [vmem:[%s1 + $0x468] sm:$0xff]
  %v225 = vld [vmem:[%s1 + $0x470] sm:$0xff]
  %v226 = vld [vmem:[%s1 + $0x478] sm:$0xff]
  %v227 = vld [vmem:[%s2] sm:$0x7]
  %v229 = vperm.slane %v227, 0
  %v230 = vperm.slane %v227, 1
  %v231 = vperm.slane %v227, 2
  %235 = vmatpush.msra.mxu0 %v128
  %236 = vmatpush.msra.mxu0 %v125
  %237 = vmatpush.msra.mxu0 %v122
  %238 = vmatpush.msra.mxu0 %v119
  %239 = vmatpush.msra.mxu0 %v116
  %240 = vmatpush.msra.mxu0 %v113
  %241 = vmatpush.msra.mxu0 %v110
  %242 = vmatpush.msra.mxu0 %v107
  %243 = vmatpush.msra.mxu0 %v104
  %244 = vmatpush.msra.mxu0 %v101
  %245 = vmatpush.msra.mxu0 %v98
  %246 = vmatpush.msra.mxu0 %v95
  %247 = vmatpush.msra.mxu0 %v92
  %248 = vmatpush.msra.mxu0 %v89
  %249 = vmatpush.msra.mxu0 %v86
  %250 = vmatpush.msra.mxu0 %v83
  %251 = vmatmul.f32.gmra.mxu0 %v32
  %v252 = vpop.f32.mrf.mxu0
  %v253 = vadd.f32 %v229, %v252
  %254 = vmatmul.f32.gmra.mxu0 %v35
  %v255 = vpop.f32.mrf.mxu0
  %v256 = vadd.f32 %v229, %v255
  %257 = vmatmul.f32.gmra.mxu0 %v38
  %v258 = vpop.f32.mrf.mxu0
  %v259 = vadd.f32 %v229, %v258
  %260 = vmatmul.f32.gmra.mxu0 %v41
  %v261 = vpop.f32.mrf.mxu0
  %v262 = vadd.f32 %v229, %v261
  %263 = vmatmul.f32.gmra.mxu0 %v44
  %v264 = vpop.f32.mrf.mxu0
  %v265 = vadd.f32 %v229, %v264
  %266 = vmatmul.f32.gmra.mxu0 %v47
  %v267 = vpop.f32.mrf.mxu0
  %v268 = vadd.f32 %v229, %v267
  %269 = vmatmul.f32.gmra.mxu0 %v50
  %v270 = vpop.f32.mrf.mxu0
  %v271 = vadd.f32 %v229, %v270
  %272 = vmatmul.f32.gmra.mxu0 %v53
  %v273 = vpop.f32.mrf.mxu0
  %v274 = vadd.f32 %v229, %v273
  %275 = vmatmul.f32.gmra.mxu0 %v56
  %v276 = vpop.f32.mrf.mxu0
  %v277 = vadd.f32 %v229, %v276
  %278 = vmatmul.f32.gmra.mxu0 %v59
  %v279 = vpop.f32.mrf.mxu0
  %v280 = vadd.f32 %v229, %v279
  %281 = vmatmul.f32.gmra.mxu0 %v62
  %v282 = vpop.f32.mrf.mxu0
  %v283 = vadd.f32 %v229, %v282
  %284 = vmatmul.f32.gmra.mxu0 %v65
  %v285 = vpop.f32.mrf.mxu0
  %v286 = vadd.f32 %v229, %v285
  %287 = vmatmul.f32.gmra.mxu0 %v68
  %v288 = vpop.f32.mrf.mxu0
  %289 = vmatmul.f32.gmra.mxu0 %v71
  %v290 = vpop.f32.mrf.mxu0
  %291 = vmatmul.f32.gmra.mxu0 %v74
  %v292 = vpop.f32.mrf.mxu0
  %293 = vmatmul.f32.gmra.mxu0 %v77
  %v294 = vpop.f32.mrf.mxu0
  %295 = vmatmul.f32.gmra.mxu0 %v80
  %v296 = vpop.f32.mrf.mxu0
  %297 = vdwg.mxu0
  %298 = vmatpush.msra.mxu0 %v176
  %299 = vmatpush.msra.mxu0 %v173
  %300 = vmatpush.msra.mxu0 %v170
  %301 = vmatpush.msra.mxu0 %v167
  %302 = vmatpush.msra.mxu0 %v164
  %303 = vmatpush.msra.mxu0 %v161
  %304 = vmatpush.msra.mxu0 %v158
  %305 = vmatpush.msra.mxu0 %v155
  %306 = vmatpush.msra.mxu0 %v152
  %307 = vmatpush.msra.mxu0 %v149
  %308 = vmatpush.msra.mxu0 %v146
  %309 = vmatpush.msra.mxu0 %v143
  %310 = vmatpush.msra.mxu0 %v140
  %311 = vmatpush.msra.mxu0 %v137
  %312 = vmatpush.msra.mxu0 %v134
  %313 = vmatpush.msra.mxu0 %v131
  %314 = vmatmul.f32.gmra.mxu0 %v33
  %v315 = vpop.f32.mrf.mxu0
  %v316 = vadd.f32 %v253, %v315
  %317 = vmatmul.f32.gmra.mxu0 %v36
  %v318 = vpop.f32.mrf.mxu0
  %v319 = vadd.f32 %v256, %v318
  %320 = vmatmul.f32.gmra.mxu0 %v39
  %v321 = vpop.f32.mrf.mxu0
  %v322 = vadd.f32 %v259, %v321
  %323 = vmatmul.f32.gmra.mxu0 %v42
  %v324 = vpop.f32.mrf.mxu0
  %v325 = vadd.f32 %v262, %v324
  %326 = vmatmul.f32.gmra.mxu0 %v45
  %v327 = vpop.f32.mrf.mxu0
  %v328 = vadd.f32 %v265, %v327
  %329 = vmatmul.f32.gmra.mxu0 %v48
  %v330 = vpop.f32.mrf.mxu0
  %v331 = vadd.f32 %v268, %v330
  %332 = vmatmul.f32.gmra.mxu0 %v51
  %v333 = vpop.f32.mrf.mxu0
  %v334 = vadd.f32 %v271, %v333
  %335 = vmatmul.f32.gmra.mxu0 %v54
  %v336 = vpop.f32.mrf.mxu0
  %v337 = vadd.f32 %v274, %v336
  %338 = vmatmul.f32.gmra.mxu0 %v57
  %v339 = vpop.f32.mrf.mxu0
  %v340 = vadd.f32 %v277, %v339
  %341 = vmatmul.f32.gmra.mxu0 %v60
  %v342 = vpop.f32.mrf.mxu0
  %v343 = vadd.f32 %v280, %v342
  %344 = vmatmul.f32.gmra.mxu0 %v63
  %v345 = vpop.f32.mrf.mxu0
  %v346 = vadd.f32 %v283, %v345
  %347 = vmatmul.f32.gmra.mxu0 %v66
  %v348 = vpop.f32.mrf.mxu0
  %v349 = vadd.f32 %v286, %v348
  %350 = vmatmul.f32.gmra.mxu0 %v69
  %v351 = vpop.f32.mrf.mxu0
  %352 = vmatmul.f32.gmra.mxu0 %v72
  %v353 = vpop.f32.mrf.mxu0
  %354 = vmatmul.f32.gmra.mxu0 %v75
  %v355 = vpop.f32.mrf.mxu0
  %356 = vmatmul.f32.gmra.mxu0 %v78
  %v357 = vpop.f32.mrf.mxu0
  %358 = vmatmul.f32.gmra.mxu0 %v81
  %v359 = vpop.f32.mrf.mxu0
  %360 = vdwg.mxu0
  %361 = vmatpush.msra.mxu0 %v224
  %362 = vmatpush.msra.mxu0 %v221
  %363 = vmatpush.msra.mxu0 %v218
  %364 = vmatpush.msra.mxu0 %v215
  %365 = vmatpush.msra.mxu0 %v212
  %366 = vmatpush.msra.mxu0 %v209
  %367 = vmatpush.msra.mxu0 %v206
  %368 = vmatpush.msra.mxu0 %v203
  %369 = vmatpush.msra.mxu0 %v200
  %370 = vmatpush.msra.mxu0 %v197
  %371 = vmatpush.msra.mxu0 %v194
  %372 = vmatpush.msra.mxu0 %v191
  %373 = vmatpush.msra.mxu0 %v188
  %374 = vmatpush.msra.mxu0 %v185
  %375 = vmatpush.msra.mxu0 %v182
  %376 = vmatpush.msra.mxu0 %v179
  %377 = vmatmul.f32.gmra.mxu0 %v34
  %v378 = vpop.f32.mrf.mxu0
  %v379 = vadd.f32 %v316, %v378
  %380 = vmatmul.f32.gmra.mxu0 %v37
  %v381 = vpop.f32.mrf.mxu0
  %v382 = vadd.f32 %v319, %v381
  %383 = vmatmul.f32.gmra.mxu0 %v40
  %v384 = vpop.f32.mrf.mxu0
  %v385 = vadd.f32 %v322, %v384
  %386 = vmatmul.f32.gmra.mxu0 %v43
  %v387 = vpop.f32.mrf.mxu0
  %v388 = vadd.f32 %v325, %v387
  %389 = vmatmul.f32.gmra.mxu0 %v46
  %v390 = vpop.f32.mrf.mxu0
  %v391 = vadd.f32 %v328, %v390
  %392 = vmatmul.f32.gmra.mxu0 %v49
  %v393 = vpop.f32.mrf.mxu0
  %v394 = vadd.f32 %v331, %v393
  %395 = vmatmul.f32.gmra.mxu0 %v52
  %v396 = vpop.f32.mrf.mxu0
  %v397 = vadd.f32 %v334, %v396
  %398 = vmatmul.f32.gmra.mxu0 %v55
  %v399 = vpop.f32.mrf.mxu0
  %v400 = vadd.f32 %v337, %v399
  %401 = vmatmul.f32.gmra.mxu0 %v58
  %v402 = vpop.f32.mrf.mxu0
  %v403 = vadd.f32 %v340, %v402
  %404 = vmatmul.f32.gmra.mxu0 %v61
  %v405 = vpop.f32.mrf.mxu0
  %v406 = vadd.f32 %v343, %v405
  %407 = vmatmul.f32.gmra.mxu0 %v64
  %v408 = vpop.f32.mrf.mxu0
  %v409 = vadd.f32 %v346, %v408
  %410 = vmatmul.f32.gmra.mxu0 %v67
  %v411 = vpop.f32.mrf.mxu0
  %v412 = vadd.f32 %v349, %v411
  %413 = vmatmul.f32.gmra.mxu0 %v70
  %v414 = vpop.f32.mrf.mxu0
  %415 = vmatmul.f32.gmra.mxu0 %v73
  %v416 = vpop.f32.mrf.mxu0
  %417 = vmatmul.f32.gmra.mxu0 %v76
  %v418 = vpop.f32.mrf.mxu0
  %419 = vmatmul.f32.gmra.mxu0 %v79
  %v420 = vpop.f32.mrf.mxu0
  %421 = vmatmul.f32.gmra.mxu0 %v82
  %v422 = vpop.f32.mrf.mxu0
  %423 = vdwg.mxu0
  %424 = vmatpush.msra.mxu0 %v129
  %425 = vmatpush.msra.mxu0 %v126
  %426 = vmatpush.msra.mxu0 %v123
  %427 = vmatpush.msra.mxu0 %v120
  %428 = vmatpush.msra.mxu0 %v117
  %429 = vmatpush.msra.mxu0 %v114
  %430 = vmatpush.msra.mxu0 %v111
  %431 = vmatpush.msra.mxu0 %v108
  %432 = vmatpush.msra.mxu0 %v105
  %433 = vmatpush.msra.mxu0 %v102
  %434 = vmatpush.msra.mxu0 %v99
  %435 = vmatpush.msra.mxu0 %v96
  %436 = vmatpush.msra.mxu0 %v93
  %437 = vmatpush.msra.mxu0 %v90
  %438 = vmatpush.msra.mxu0 %v87
  %439 = vmatpush.msra.mxu0 %v84
  %440 = vmatmul.f32.gmra.mxu0 %v32
  %v441 = vpop.f32.mrf.mxu0
  %v442 = vadd.f32 %v230, %v441
  %443 = vmatmul.f32.gmra.mxu0 %v35
  %v444 = vpop.f32.mrf.mxu0
  %v445 = vadd.f32 %v230, %v444
  %446 = vmatmul.f32.gmra.mxu0 %v38
  %v447 = vpop.f32.mrf.mxu0
  %v448 = vadd.f32 %v230, %v447
  %449 = vmatmul.f32.gmra.mxu0 %v41
  %v450 = vpop.f32.mrf.mxu0
  %v451 = vadd.f32 %v230, %v450
  %452 = vmatmul.f32.gmra.mxu0 %v44
  %v453 = vpop.f32.mrf.mxu0
  %v454 = vadd.f32 %v230, %v453
  %455 = vmatmul.f32.gmra.mxu0 %v47
  %v456 = vpop.f32.mrf.mxu0
  %v457 = vadd.f32 %v230, %v456
  %458 = vmatmul.f32.gmra.mxu0 %v50
  %v459 = vpop.f32.mrf.mxu0
  %v460 = vadd.f32 %v230, %v459
  %461 = vmatmul.f32.gmra.mxu0 %v53
  %v462 = vpop.f32.mrf.mxu0
  %v463 = vadd.f32 %v230, %v462
  %464 = vmatmul.f32.gmra.mxu0 %v56
  %v465 = vpop.f32.mrf.mxu0
  %v466 = vadd.f32 %v230, %v465
  %467 = vmatmul.f32.gmra.mxu0 %v59
  %v468 = vpop.f32.mrf.mxu0
  %v469 = vadd.f32 %v230, %v468
  %470 = vmatmul.f32.gmra.mxu0 %v62
  %v471 = vpop.f32.mrf.mxu0
  %v472 = vadd.f32 %v230, %v471
  %473 = vmatmul.f32.gmra.mxu0 %v65
  %v474 = vpop.f32.mrf.mxu0
  %v475 = vadd.f32 %v230, %v474
  %476 = vmatmul.f32.gmra.mxu0 %v68
  %v477 = vpop.f32.mrf.mxu0
  %v478 = vadd.f32 %v230, %v477
  %479 = vmatmul.f32.gmra.mxu0 %v71
  %v480 = vpop.f32.mrf.mxu0
  %v481 = vadd.f32 %v230, %v480
  %482 = vmatmul.f32.gmra.mxu0 %v74
  %v483 = vpop.f32.mrf.mxu0
  %v484 = vadd.f32 %v230, %v483
  %485 = vmatmul.f32.gmra.mxu0 %v77
  %v486 = vpop.f32.mrf.mxu0
  %v487 = vadd.f32 %v230, %v486
  %488 = vmatmul.f32.gmra.mxu0 %v80
  %v489 = vpop.f32.mrf.mxu0
  %490 = vdwg.mxu0
  %491 = vmatpush.msra.mxu0 %v177
  %492 = vmatpush.msra.mxu0 %v174
  %493 = vmatpush.msra.mxu0 %v171
  %494 = vmatpush.msra.mxu0 %v168
  %495 = vmatpush.msra.mxu0 %v165
  %496 = vmatpush.msra.mxu0 %v162
  %497 = vmatpush.msra.mxu0 %v159
  %498 = vmatpush.msra.mxu0 %v156
  %499 = vmatpush.msra.mxu0 %v153
  %500 = vmatpush.msra.mxu0 %v150
  %501 = vmatpush.msra.mxu0 %v147
  %502 = vmatpush.msra.mxu0 %v144
  %503 = vmatpush.msra.mxu0 %v141
  %504 = vmatpush.msra.mxu0 %v138
  %505 = vmatpush.msra.mxu0 %v135
  %506 = vmatpush.msra.mxu0 %v132
  %507 = vmatmul.f32.gmra.mxu0 %v33
  %v508 = vpop.f32.mrf.mxu0
  %v509 = vadd.f32 %v442, %v508
  %510 = vmatmul.f32.gmra.mxu0 %v36
  %v511 = vpop.f32.mrf.mxu0
  %v512 = vadd.f32 %v445, %v511
  %513 = vmatmul.f32.gmra.mxu0 %v39
  %v514 = vpop.f32.mrf.mxu0
  %v515 = vadd.f32 %v448, %v514
  %516 = vmatmul.f32.gmra.mxu0 %v42
  %v517 = vpop.f32.mrf.mxu0
  %v518 = vadd.f32 %v451, %v517
  %519 = vmatmul.f32.gmra.mxu0 %v45
  %v520 = vpop.f32.mrf.mxu0
  %v521 = vadd.f32 %v454, %v520
  %522 = vmatmul.f32.gmra.mxu0 %v48
  %v523 = vpop.f32.mrf.mxu0
  %v524 = vadd.f32 %v457, %v523
  %525 = vmatmul.f32.gmra.mxu0 %v51
  %v526 = vpop.f32.mrf.mxu0
  %v527 = vadd.f32 %v460, %v526
  %528 = vmatmul.f32.gmra.mxu0 %v54
  %v529 = vpop.f32.mrf.mxu0
  %v530 = vadd.f32 %v463, %v529
  %531 = vmatmul.f32.gmra.mxu0 %v57
  %v532 = vpop.f32.mrf.mxu0
  %v533 = vadd.f32 %v466, %v532
  %534 = vmatmul.f32.gmra.mxu0 %v60
  %v535 = vpop.f32.mrf.mxu0
  %v536 = vadd.f32 %v469, %v535
  %537 = vmatmul.f32.gmra.mxu0 %v63
  %v538 = vpop.f32.mrf.mxu0
  %v539 = vadd.f32 %v472, %v538
  %540 = vmatmul.f32.gmra.mxu0 %v66
  %v541 = vpop.f32.mrf.mxu0
  %v542 = vadd.f32 %v475, %v541
  %543 = vmatmul.f32.gmra.mxu0 %v69
  %v544 = vpop.f32.mrf.mxu0
  %v545 = vadd.f32 %v478, %v544
  %546 = vmatmul.f32.gmra.mxu0 %v72
  %v547 = vpop.f32.mrf.mxu0
  %v548 = vadd.f32 %v481, %v547
  %549 = vmatmul.f32.gmra.mxu0 %v75
  %v550 = vpop.f32.mrf.mxu0
  %v551 = vadd.f32 %v484, %v550
  %552 = vmatmul.f32.gmra.mxu0 %v78
  %v553 = vpop.f32.mrf.mxu0
  %v554 = vadd.f32 %v487, %v553
  %555 = vmatmul.f32.gmra.mxu0 %v81
  %v556 = vpop.f32.mrf.mxu0
  %557 = vdwg.mxu0
  %558 = vmatpush.msra.mxu0 %v225
  %559 = vmatpush.msra.mxu0 %v222
  %560 = vmatpush.msra.mxu0 %v219
  %561 = vmatpush.msra.mxu0 %v216
  %562 = vmatpush.msra.mxu0 %v213
  %563 = vmatpush.msra.mxu0 %v210
  %564 = vmatpush.msra.mxu0 %v207
  %565 = vmatpush.msra.mxu0 %v204
  %566 = vmatpush.msra.mxu0 %v201
  %567 = vmatpush.msra.mxu0 %v198
  %568 = vmatpush.msra.mxu0 %v195
  %569 = vmatpush.msra.mxu0 %v192
  %570 = vmatpush.msra.mxu0 %v189
  %571 = vmatpush.msra.mxu0 %v186
  %572 = vmatpush.msra.mxu0 %v183
  %573 = vmatpush.msra.mxu0 %v180
  %574 = vmatmul.f32.gmra.mxu0 %v34
  %v575 = vpop.f32.mrf.mxu0
  %v576 = vadd.f32 %v509, %v575
  %577 = vmatmul.f32.gmra.mxu0 %v37
  %v578 = vpop.f32.mrf.mxu0
  %v579 = vadd.f32 %v512, %v578
  %580 = vmatmul.f32.gmra.mxu0 %v40
  %v581 = vpop.f32.mrf.mxu0
  %v582 = vadd.f32 %v515, %v581
  %583 = vmatmul.f32.gmra.mxu0 %v43
  %v584 = vpop.f32.mrf.mxu0
  %v585 = vadd.f32 %v518, %v584
  %586 = vmatmul.f32.gmra.mxu0 %v46
  %v587 = vpop.f32.mrf.mxu0
  %v588 = vadd.f32 %v521, %v587
  %589 = vmatmul.f32.gmra.mxu0 %v49
  %v590 = vpop.f32.mrf.mxu0
  %v591 = vadd.f32 %v524, %v590
  %592 = vmatmul.f32.gmra.mxu0 %v52
  %v593 = vpop.f32.mrf.mxu0
  %v594 = vadd.f32 %v527, %v593
  %595 = vmatmul.f32.gmra.mxu0 %v55
  %v596 = vpop.f32.mrf.mxu0
  %v597 = vadd.f32 %v530, %v596
  %598 = vmatmul.f32.gmra.mxu0 %v58
  %v599 = vpop.f32.mrf.mxu0
  %v600 = vadd.f32 %v533, %v599
  %601 = vmatmul.f32.gmra.mxu0 %v61
  %v602 = vpop.f32.mrf.mxu0
  %v603 = vadd.f32 %v536, %v602
  %604 = vmatmul.f32.gmra.mxu0 %v64
  %v605 = vpop.f32.mrf.mxu0
  %v606 = vadd.f32 %v539, %v605
  %607 = vmatmul.f32.gmra.mxu0 %v67
  %v608 = vpop.f32.mrf.mxu0
  %v609 = vadd.f32 %v542, %v608
  %610 = vmatmul.f32.gmra.mxu0 %v70
  %v611 = vpop.f32.mrf.mxu0
  %v612 = vadd.f32 %v545, %v611
  %613 = vmatmul.f32.gmra.mxu0 %v73
  %v614 = vpop.f32.mrf.mxu0
  %v615 = vadd.f32 %v548, %v614
  %616 = vmatmul.f32.gmra.mxu0 %v76
  %v617 = vpop.f32.mrf.mxu0
  %v618 = vadd.f32 %v551, %v617
  %619 = vmatmul.f32.gmra.mxu0 %v79
  %v620 = vpop.f32.mrf.mxu0
  %v621 = vadd.f32 %v554, %v620
  %622 = vmatmul.f32.gmra.mxu0 %v82
  %v623 = vpop.f32.mrf.mxu0
  %624 = vdwg.mxu0
  %625 = vmatpush.msra.mxu0 %v130
  %626 = vmatpush.msra.mxu0 %v127
  %627 = vmatpush.msra.mxu0 %v124
  %628 = vmatpush.msra.mxu0 %v121
  %629 = vmatpush.msra.mxu0 %v118
  %630 = vmatpush.msra.mxu0 %v115
  %631 = vmatpush.msra.mxu0 %v112
  %632 = vmatpush.msra.mxu0 %v109
  %633 = vmatpush.msra.mxu0 %v106
  %634 = vmatpush.msra.mxu0 %v103
  %635 = vmatpush.msra.mxu0 %v100
  %636 = vmatpush.msra.mxu0 %v97
  %637 = vmatpush.msra.mxu0 %v94
  %638 = vmatpush.msra.mxu0 %v91
  %639 = vmatpush.msra.mxu0 %v88
  %640 = vmatpush.msra.mxu0 %v85
  %641 = vmatmul.f32.gmra.mxu0 %v32
  %v642 = vpop.f32.mrf.mxu0
  %v643 = vadd.f32 %v231, %v642
  %644 = vmatmul.f32.gmra.mxu0 %v35
  %v645 = vpop.f32.mrf.mxu0
  %v646 = vadd.f32 %v231, %v645
  %647 = vmatmul.f32.gmra.mxu0 %v38
  %v648 = vpop.f32.mrf.mxu0
  %v649 = vadd.f32 %v231, %v648
  %650 = vmatmul.f32.gmra.mxu0 %v41
  %v651 = vpop.f32.mrf.mxu0
  %v652 = vadd.f32 %v231, %v651
  %653 = vmatmul.f32.gmra.mxu0 %v44
  %v654 = vpop.f32.mrf.mxu0
  %655 = vmatmul.f32.gmra.mxu0 %v47
  %v656 = vpop.f32.mrf.mxu0
  %657 = vmatmul.f32.gmra.mxu0 %v50
  %v658 = vpop.f32.mrf.mxu0
  %659 = vmatmul.f32.gmra.mxu0 %v53
  %v660 = vpop.f32.mrf.mxu0
  %661 = vmatmul.f32.gmra.mxu0 %v56
  %v662 = vpop.f32.mrf.mxu0
  %663 = vmatmul.f32.gmra.mxu0 %v59
  %v664 = vpop.f32.mrf.mxu0
  %665 = vmatmul.f32.gmra.mxu0 %v62
  %v666 = vpop.f32.mrf.mxu0
  %667 = vmatmul.f32.gmra.mxu0 %v65
  %v668 = vpop.f32.mrf.mxu0
  %669 = vmatmul.f32.gmra.mxu0 %v68
  %v670 = vpop.f32.mrf.mxu0
  %671 = vmatmul.f32.gmra.mxu0 %v71
  %v672 = vpop.f32.mrf.mxu0
  %673 = vmatmul.f32.gmra.mxu0 %v74
  %v674 = vpop.f32.mrf.mxu0
  %675 = vmatmul.f32.gmra.mxu0 %v77
  %v676 = vpop.f32.mrf.mxu0
  %677 = vmatmul.f32.gmra.mxu0 %v80
  %v678 = vpop.f32.mrf.mxu0
  %679 = vdwg.mxu0
  %680 = vmatpush.msra.mxu0 %v178
  %681 = vmatpush.msra.mxu0 %v175
  %682 = vmatpush.msra.mxu0 %v172
  %683 = vmatpush.msra.mxu0 %v169
  %684 = vmatpush.msra.mxu0 %v166
  %685 = vmatpush.msra.mxu0 %v163
  %686 = vmatpush.msra.mxu0 %v160
  %687 = vmatpush.msra.mxu0 %v157
  %688 = vmatpush.msra.mxu0 %v154
  %689 = vmatpush.msra.mxu0 %v151
  %690 = vmatpush.msra.mxu0 %v148
  %691 = vmatpush.msra.mxu0 %v145
  %692 = vmatpush.msra.mxu0 %v142
  %693 = vmatpush.msra.mxu0 %v139
  %694 = vmatpush.msra.mxu0 %v136
  %695 = vmatpush.msra.mxu0 %v133
  %696 = vmatmul.f32.gmra.mxu0 %v33
  %v697 = vpop.f32.mrf.mxu0
  %v698 = vadd.f32 %v643, %v697
  %699 = vmatmul.f32.gmra.mxu0 %v36
  %v700 = vpop.f32.mrf.mxu0
  %v701 = vadd.f32 %v646, %v700
  %702 = vmatmul.f32.gmra.mxu0 %v39
  %v703 = vpop.f32.mrf.mxu0
  %v704 = vadd.f32 %v649, %v703
  %705 = vmatmul.f32.gmra.mxu0 %v42
  %v706 = vpop.f32.mrf.mxu0
  %v707 = vadd.f32 %v652, %v706
  %708 = vmatmul.f32.gmra.mxu0 %v45
  %v709 = vpop.f32.mrf.mxu0
  %710 = vmatmul.f32.gmra.mxu0 %v48
  %v711 = vpop.f32.mrf.mxu0
  %712 = vmatmul.f32.gmra.mxu0 %v51
  %v713 = vpop.f32.mrf.mxu0
  %714 = vmatmul.f32.gmra.mxu0 %v54
  %v715 = vpop.f32.mrf.mxu0
  %716 = vmatmul.f32.gmra.mxu0 %v57
  %v717 = vpop.f32.mrf.mxu0
  %718 = vmatmul.f32.gmra.mxu0 %v60
  %v719 = vpop.f32.mrf.mxu0
  %720 = vmatmul.f32.gmra.mxu0 %v63
  %v721 = vpop.f32.mrf.mxu0
  %722 = vmatmul.f32.gmra.mxu0 %v66
  %v723 = vpop.f32.mrf.mxu0
  %724 = vmatmul.f32.gmra.mxu0 %v69
  %v725 = vpop.f32.mrf.mxu0
  %726 = vmatmul.f32.gmra.mxu0 %v72
  %v727 = vpop.f32.mrf.mxu0
  %728 = vmatmul.f32.gmra.mxu0 %v75
  %v729 = vpop.f32.mrf.mxu0
  %730 = vmatmul.f32.gmra.mxu0 %v78
  %v731 = vpop.f32.mrf.mxu0
  %732 = vmatmul.f32.gmra.mxu0 %v81
  %v733 = vpop.f32.mrf.mxu0
  %734 = vdwg.mxu0
  %735 = vmatpush.msra.mxu0 %v226
  %736 = vmatpush.msra.mxu0 %v223
  %737 = vmatpush.msra.mxu0 %v220
  %738 = vmatpush.msra.mxu0 %v217
  %739 = vmatpush.msra.mxu0 %v214
  %740 = vmatpush.msra.mxu0 %v211
  %741 = vmatpush.msra.mxu0 %v208
  %742 = vmatpush.msra.mxu0 %v205
  %743 = vmatpush.msra.mxu0 %v202
  %744 = vmatpush.msra.mxu0 %v199
  %745 = vmatpush.msra.mxu0 %v196
  %746 = vmatpush.msra.mxu0 %v193
  %747 = vmatpush.msra.mxu0 %v190
  %748 = vmatpush.msra.mxu0 %v187
  %749 = vmatpush.msra.mxu0 %v184
  %750 = vmatpush.msra.mxu0 %v181
  %751 = vmatmul.f32.gmra.mxu0 %v34
  %v752 = vpop.f32.mrf.mxu0
  %v753 = vadd.f32 %v698, %v752
  %754 = vmatmul.f32.gmra.mxu0 %v37
  %v755 = vpop.f32.mrf.mxu0
  %v756 = vadd.f32 %v701, %v755
  %757 = vmatmul.f32.gmra.mxu0 %v40
  %v758 = vpop.f32.mrf.mxu0
  %v759 = vadd.f32 %v704, %v758
  %760 = vmatmul.f32.gmra.mxu0 %v43
  %v761 = vpop.f32.mrf.mxu0
  %v762 = vadd.f32 %v707, %v761
  %763 = vmatmul.f32.gmra.mxu0 %v46
  %v764 = vpop.f32.mrf.mxu0
  %765 = vmatmul.f32.gmra.mxu0 %v49
  %v766 = vpop.f32.mrf.mxu0
  %767 = vmatmul.f32.gmra.mxu0 %v52
  %v768 = vpop.f32.mrf.mxu0
  %769 = vmatmul.f32.gmra.mxu0 %v55
  %v770 = vpop.f32.mrf.mxu0
  %771 = vmatmul.f32.gmra.mxu0 %v58
  %v772 = vpop.f32.mrf.mxu0
  %773 = vmatmul.f32.gmra.mxu0 %v61
  %v774 = vpop.f32.mrf.mxu0
  %775 = vmatmul.f32.gmra.mxu0 %v64
  %v776 = vpop.f32.mrf.mxu0
  %777 = vmatmul.f32.gmra.mxu0 %v67
  %v778 = vpop.f32.mrf.mxu0
  %779 = vmatmul.f32.gmra.mxu0 %v70
  %v780 = vpop.f32.mrf.mxu0
  %781 = vmatmul.f32.gmra.mxu0 %v73
  %v782 = vpop.f32.mrf.mxu0
  %783 = vmatmul.f32.gmra.mxu0 %v76
  %v784 = vpop.f32.mrf.mxu0
  %785 = vmatmul.f32.gmra.mxu0 %v79
  %v786 = vpop.f32.mrf.mxu0
  %787 = vmatmul.f32.gmra.mxu0 %v82
  %v788 = vpop.f32.mrf.mxu0
  %789 = vdwg.mxu0
  %v790 = vmax.f32 %v379, %v385
  %v791 = vmax.f32 %v382, %v388
  %v792 = vmax.f32 %v790, %v791
  %v793 = vmax.f32 %v391, %v397
  %v794 = vmax.f32 %v394, %v400
  %v795 = vmax.f32 %v793, %v794
  %v796 = vmax.f32 %v403, %v409
  %v797 = vmax.f32 %v406, %v412
  %v798 = vmax.f32 %v796, %v797
  %v799 = vmax.f32 %v576, %v579
  %v800 = vmax.f32 %v799, %v582
  %v801 = vmax.f32 %v800, %v585
  %v802 = vmax.f32 %v588, %v591
  %v803 = vmax.f32 %v802, %v594
  %v804 = vmax.f32 %v803, %v597
  %v805 = vmax.f32 %v600, %v603
  %v806 = vmax.f32 %v805, %v606
  %v807 = vmax.f32 %v806, %v609
  %v808 = vmax.f32 %v612, %v615
  %v809 = vmax.f32 %v808, %v618
  %v810 = vmax.f32 %v809, %v621
  %v811 = vmax.f32 %v753, %v756
  %v812 = vmax.f32 %v811, %v759
  %v813 = vmax.f32 %v812, %v762
  %v814 = vmax.f32 %v792, %v798
  %v815 = vmax.f32 %v795, %v801
  %v816 = vmax.f32 %v814, %v815
  %v817 = vmax.f32 %v804, %v810
  %v818 = vmax.f32 %v807, %v813
  %v819 = vmax.f32 %v817, %v818
  %v820 = vld [vmem:[%s3] sm:$0xff]
  %v821 = vld [vmem:[%s3 + $0x8] sm:$0xff]
  %v822 = vld [vmem:[%s3 + $0x10] sm:$0xff]
  %v823 = vld [vmem:[%s3 + $0x18] sm:$0xff]
  %v824 = vld [vmem:[%s3 + $0x20] sm:$0xff]
  %v825 = vld [vmem:[%s3 + $0x28] sm:$0xff]
  %v826 = vld [vmem:[%s3 + $0x30] sm:$0xff]
  %v827 = vld [vmem:[%s3 + $0x38] sm:$0xff]
  %v828 = vld [vmem:[%s3 + $0x40] sm:$0xff]
  %v829 = vld [vmem:[%s3 + $0x48] sm:$0xff]
  %v830 = vld [vmem:[%s3 + $0x50] sm:$0xff]
  %v831 = vld [vmem:[%s3 + $0x58] sm:$0xff]
  %v832 = vld [vmem:[%s3 + $0x60] sm:$0xff]
  %v833 = vld [vmem:[%s3 + $0x68] sm:$0xff]
  %v834 = vld [vmem:[%s3 + $0x70] sm:$0xff]
  %v835 = vld [vmem:[%s3 + $0x78] sm:$0xff]
  %v836 = vld [vmem:[%s3 + $0x80] sm:$0xff]
  %v837 = vld [vmem:[%s3 + $0x88] sm:$0xff]
  %v838 = vld [vmem:[%s3 + $0x90] sm:$0xff]
  %v839 = vld [vmem:[%s3 + $0x98] sm:$0xff]
  %v840 = vld [vmem:[%s3 + $0xa0] sm:$0xff]
  %v841 = vld [vmem:[%s3 + $0xa8] sm:$0xff]
  %v842 = vld [vmem:[%s3 + $0xb0] sm:$0xff]
  %v843 = vld [vmem:[%s3 + $0xb8] sm:$0xff]
  %v844 = vld [vmem:[%s3 + $0xc0] sm:$0xff]
  %v845 = vld [vmem:[%s3 + $0xc8] sm:$0xff]
  %v846 = vld [vmem:[%s3 + $0xd0] sm:$0xff]
  %v847 = vld [vmem:[%s3 + $0xd8] sm:$0xff]
  %v848 = vld [vmem:[%s3 + $0xe0] sm:$0xff]
  %v849 = vld [vmem:[%s3 + $0xe8] sm:$0xff]
  %v850 = vld [vmem:[%s3 + $0xf0] sm:$0xff]
  %v851 = vld [vmem:[%s3 + $0xf8] sm:$0xff]
  %v852 = vld [vmem:[%s3 + $0x100] sm:$0xff]
  %v853 = vld [vmem:[%s3 + $0x108] sm:$0xff]
  %v854 = vld [vmem:[%s3 + $0x110] sm:$0xff]
  %v855 = vld [vmem:[%s3 + $0x118] sm:$0xff]
  %v856 = vld [vmem:[%s3 + $0x120] sm:$0xff]
  %v857 = vld [vmem:[%s3 + $0x128] sm:$0xff]
  %v858 = vld [vmem:[%s3 + $0x130] sm:$0xff]
  %v859 = vld [vmem:[%s3 + $0x138] sm:$0xff]
  %v860 = vld [vmem:[%s3 + $0x140] sm:$0xff]
  %v861 = vld [vmem:[%s3 + $0x148] sm:$0xff]
  %v862 = vld [vmem:[%s3 + $0x150] sm:$0xff]
  %v863 = vld [vmem:[%s3 + $0x158] sm:$0xff]
  %v864 = vld [vmem:[%s3 + $0x160] sm:$0xff]
  %v865 = vld [vmem:[%s3 + $0x168] sm:$0xff]
  %v866 = vld [vmem:[%s3 + $0x170] sm:$0xff]
  %v867 = vld [vmem:[%s3 + $0x178] sm:$0xff]
  %v868 = vld [vmem:[%s4] sm:$0x7]
  %v870 = vperm.slane %v868, 0
  %v871 = vperm.slane %v868, 1
  %v872 = vperm.slane %v868, 2
  %876 = vmatpush.msra.mxu0 %v865
  %877 = vmatpush.msra.mxu0 %v862
  %878 = vmatpush.msra.mxu0 %v859
  %879 = vmatpush.msra.mxu0 %v856
  %880 = vmatpush.msra.mxu0 %v853
  %881 = vmatpush.msra.mxu0 %v850
  %882 = vmatpush.msra.mxu0 %v847
  %883 = vmatpush.msra.mxu0 %v844
  %884 = vmatpush.msra.mxu0 %v841
  %885 = vmatpush.msra.mxu0 %v838
  %886 = vmatpush.msra.mxu0 %v835
  %887 = vmatpush.msra.mxu0 %v832
  %888 = vmatpush.msra.mxu0 %v829
  %889 = vmatpush.msra.mxu0 %v826
  %890 = vmatpush.msra.mxu0 %v823
  %891 = vmatpush.msra.mxu0 %v820
  %892 = vmatmul.f32.gmra.mxu0 %v816
  %v893 = vpop.f32.mrf.mxu0
  %v894 = vadd.f32 %v870, %v893
  %895 = vmatmul.f32.gmra.mxu0 %v819
  %v896 = vpop.f32.mrf.mxu0
  %v897 = vadd.f32 %v870, %v896
  %898 = vdwg.mxu0
  %899 = vmatpush.msra.mxu0 %v866
  %900 = vmatpush.msra.mxu0 %v863
  %901 = vmatpush.msra.mxu0 %v860
  %902 = vmatpush.msra.mxu0 %v857
  %903 = vmatpush.msra.mxu0 %v854
  %904 = vmatpush.msra.mxu0 %v851
  %905 = vmatpush.msra.mxu0 %v848
  %906 = vmatpush.msra.mxu0 %v845
  %907 = vmatpush.msra.mxu0 %v842
  %908 = vmatpush.msra.mxu0 %v839
  %909 = vmatpush.msra.mxu0 %v836
  %910 = vmatpush.msra.mxu0 %v833
  %911 = vmatpush.msra.mxu0 %v830
  %912 = vmatpush.msra.mxu0 %v827
  %913 = vmatpush.msra.mxu0 %v824
  %914 = vmatpush.msra.mxu0 %v821
  %915 = vmatmul.f32.gmra.mxu0 %v816
  %v916 = vpop.f32.mrf.mxu0
  %v917 = vadd.f32 %v871, %v916
  %918 = vmatmul.f32.gmra.mxu0 %v819
  %v919 = vpop.f32.mrf.mxu0
  %v920 = vadd.f32 %v871, %v919
  %921 = vdwg.mxu0
  %922 = vmatpush.msra.mxu0 %v867
  %923 = vmatpush.msra.mxu0 %v864
  %924 = vmatpush.msra.mxu0 %v861
  %925 = vmatpush.msra.mxu0 %v858
  %926 = vmatpush.msra.mxu0 %v855
  %927 = vmatpush.msra.mxu0 %v852
  %928 = vmatpush.msra.mxu0 %v849
  %929 = vmatpush.msra.mxu0 %v846
  %930 = vmatpush.msra.mxu0 %v843
  %931 = vmatpush.msra.mxu0 %v840
  %932 = vmatpush.msra.mxu0 %v837
  %933 = vmatpush.msra.mxu0 %v834
  %934 = vmatpush.msra.mxu0 %v831
  %935 = vmatpush.msra.mxu0 %v828
  %936 = vmatpush.msra.mxu0 %v825
  %937 = vmatpush.msra.mxu0 %v822
  %938 = vmatmul.f32.gmra.mxu0 %v816
  %v939 = vpop.f32.mrf.mxu0
  %v940 = vadd.f32 %v872, %v939
  %941 = vmatmul.f32.gmra.mxu0 %v819
  %v942 = vpop.f32.mrf.mxu0
  %v943 = vadd.f32 %v872, %v942
  %944 = vdwg.mxu0
  %945 = vst [vmem:[#allocation2] sm:$0xff] %v894
  %946 = vst [vmem:[#allocation2 + $0x8] sm:$0xff] %v917
  %947 = vst [vmem:[#allocation2 + $0x10] sm:$0xff] %v940
  %948 = vst [vmem:[#allocation2 + $0x18] sm:$0xff] %v897
  %949 = vst [vmem:[#allocation2 + $0x20] sm:$0xff] %v920
  %950 = vst [vmem:[#allocation2 + $0x28] sm:$0xff] %v943
  %v951 = vld [vmem:[%s5] sm:$0xff]
  %v952 = vld [vmem:[%s5 + $0x8] sm:$0xff]
  %v953 = vld [vmem:[%s5 + $0x10] sm:$0xff]
  %v954 = vld [vmem:[%s5 + $0x18] sm:$0xff]
  %v955 = vld [vmem:[%s5 + $0x20] sm:$0xff]
  %v956 = vld [vmem:[%s5 + $0x28] sm:$0xff]
  %v957 = vld [vmem:[%s5 + $0x30] sm:$0xff]
  %v958 = vld [vmem:[%s5 + $0x38] sm:$0xff]
  %v959 = vld [vmem:[%s5 + $0x40] sm:$0xff]
  %v960 = vld [vmem:[%s5 + $0x48] sm:$0xff]
  %v961 = vld [vmem:[%s5 + $0x50] sm:$0xff]
  %v962 = vld [vmem:[%s5 + $0x58] sm:$0xff]
  %v963 = vld [vmem:[%s5 + $0x60] sm:$0xff]
  %v964 = vld [vmem:[%s5 + $0x68] sm:$0xff]
  %v965 = vld [vmem:[%s5 + $0x70] sm:$0xff]
  %v966 = vld [vmem:[%s5 + $0x78] sm:$0xff]
  %v967 = vld [vmem:[%s5 + $0x80] sm:$0xff]
  %v968 = vld [vmem:[%s5 + $0x88] sm:$0xff]
  %v969 = vld [vmem:[%s5 + $0x90] sm:$0xff]
  %v970 = vld [vmem:[%s5 + $0x98] sm:$0xff]
  %v971 = vld [vmem:[%s5 + $0xa0] sm:$0xff]
  %v972 = vld [vmem:[%s5 + $0xa8] sm:$0xff]
  %v973 = vld [vmem:[%s5 + $0xb0] sm:$0xff]
  %v974 = vld [vmem:[%s5 + $0xb8] sm:$0xff]
  %v975 = vld [vmem:[%s5 + $0xc0] sm:$0xff]
  %v976 = vld [vmem:[%s5 + $0xc8] sm:$0xff]
  %v977 = vld [vmem:[%s5 + $0xd0] sm:$0xff]
  %v978 = vld [vmem:[%s5 + $0xd8] sm:$0xff]
  %v979 = vld [vmem:[%s5 + $0xe0] sm:$0xff]
  %v980 = vld [vmem:[%s5 + $0xe8] sm:$0xff]
  %v981 = vld [vmem:[%s5 + $0xf0] sm:$0xff]
  %v982 = vld [vmem:[%s5 + $0xf8] sm:$0xff]
  %v983 = vld [vmem:[%s5 + $0x100] sm:$0xff]
  %v984 = vld [vmem:[%s5 + $0x108] sm:$0xff]
  %v985 = vld [vmem:[%s5 + $0x110] sm:$0xff]
  %v986 = vld [vmem:[%s5 + $0x118] sm:$0xff]
  %v987 = vld [vmem:[%s5 + $0x120] sm:$0xff]
  %v988 = vld [vmem:[%s5 + $0x128] sm:$0xff]
  %v989 = vld [vmem:[%s5 + $0x130] sm:$0xff]
  %v990 = vld [vmem:[%s5 + $0x138] sm:$0xff]
  %v991 = vld [vmem:[%s5 + $0x140] sm:$0xff]
  %v992 = vld [vmem:[%s5 + $0x148] sm:$0xff]
  %v993 = vld [vmem:[%s5 + $0x150] sm:$0xff]
  %v994 = vld [vmem:[%s5 + $0x158] sm:$0xff]
  %v995 = vld [vmem:[%s5 + $0x160] sm:$0xff]
  %v996 = vld [vmem:[%s5 + $0x168] sm:$0xff]
  %v997 = vld [vmem:[%s5 + $0x170] sm:$0xff]
  %v998 = vld [vmem:[%s5 + $0x178] sm:$0xff]
  %v999 = vld [vmem:[%s6] sm:$0x7]
  %v1000 = vld [vmem:[#allocation2] sm:$0xff]
  %v1001 = vld [vmem:[#allocation2 + $0x8] sm:$0xff]
  %v1002 = vld [vmem:[#allocation2 + $0x10] sm:$0xff]
  %v1004 = vperm.slane %v999, 0
  %v1005 = vperm.slane %v999, 1
  %v1006 = vperm.slane %v999, 2
  %1010 = vmatpush.msra.mxu0 %v996
  %1011 = vmatpush.msra.mxu0 %v993
  %1012 = vmatpush.msra.mxu0 %v990
  %1013 = vmatpush.msra.mxu0 %v987
  %1014 = vmatpush.msra.mxu0 %v984
  %1015 = vmatpush.msra.mxu0 %v981
  %1016 = vmatpush.msra.mxu0 %v978
  %1017 = vmatpush.msra.mxu0 %v975
  %1018 = vmatpush.msra.mxu0 %v972
  %1019 = vmatpush.msra.mxu0 %v969
  %1020 = vmatpush.msra.mxu0 %v966
  %1021 = vmatpush.msra.mxu0 %v963
  %1022 = vmatpush.msra.mxu0 %v960
  %1023 = vmatpush.msra.mxu0 %v957
  %1024 = vmatpush.msra.mxu0 %v954
  %1025 = vmatpush.msra.mxu0 %v951
  %1026 = vmatmul.f32.gmra.mxu0 0.0
  %v1027 = vpop.f32.mrf.mxu0
  %v1028 = vadd.f32 %v1004, %v1027
  %1029 = vdwg.mxu0
  %1030 = vmatpush.msra.mxu0 %v997
  %1031 = vmatpush.msra.mxu0 %v994
  %1032 = vmatpush.msra.mxu0 %v991
  %1033 = vmatpush.msra.mxu0 %v988
  %1034 = vmatpush.msra.mxu0 %v985
  %1035 = vmatpush.msra.mxu0 %v982
  %1036 = vmatpush.msra.mxu0 %v979
  %1037 = vmatpush.msra.mxu0 %v976
  %1038 = vmatpush.msra.mxu0 %v973
  %1039 = vmatpush.msra.mxu0 %v970
  %1040 = vmatpush.msra.mxu0 %v967
  %1041 = vmatpush.msra.mxu0 %v964
  %1042 = vmatpush.msra.mxu0 %v961
  %1043 = vmatpush.msra.mxu0 %v958
  %1044 = vmatpush.msra.mxu0 %v955
  %1045 = vmatpush.msra.mxu0 %v952
  %1046 = vmatmul.f32.gmra.mxu0 0.0
  %v1047 = vpop.f32.mrf.mxu0
  %v1048 = vadd.f32 %v1005, %v1047
  %1049 = vdwg.mxu0
  %1050 = vmatpush.msra.mxu0 %v998
  %1051 = vmatpush.msra.mxu0 %v995
  %1052 = vmatpush.msra.mxu0 %v992
  %1053 = vmatpush.msra.mxu0 %v989
  %1054 = vmatpush.msra.mxu0 %v986
  %1055 = vmatpush.msra.mxu0 %v983
  %1056 = vmatpush.msra.mxu0 %v980
  %1057 = vmatpush.msra.mxu0 %v977
  %1058 = vmatpush.msra.mxu0 %v974
  %1059 = vmatpush.msra.mxu0 %v971
  %1060 = vmatpush.msra.mxu0 %v968
  %1061 = vmatpush.msra.mxu0 %v965
  %1062 = vmatpush.msra.mxu0 %v962
  %1063 = vmatpush.msra.mxu0 %v959
  %1064 = vmatpush.msra.mxu0 %v956
  %1065 = vmatpush.msra.mxu0 %v953
  %1066 = vmatmul.f32.gmra.mxu0 0.0
  %v1067 = vpop.f32.mrf.mxu0
  %v1068 = vadd.f32 %v1006, %v1067
  %1069 = vdwg.mxu0
  %v1070 = vadd.f32 %v1000, %v1028
  %v1071 = vxor.u32 %v1070, 2147483648
  %v1072 = vmul.f32 %v1071, 1.442695
  %v1073 = vpow.pop %v1072
  %v1074 = vadd.f32 %v1073, 1.0
  %v1075 = vrcp.pop %v1074
  %v1076 = vmul.f32 %v1074, %v1075
  %v1077 = vsub.f32 1.0, %v1076
  %v1078 = vmul.f32 %v1075, %v1077
  %v1079 = vadd.f32 %v1075, %v1078
  %vm1080 = vweird.f32 %v1074
  %vm1081 = vweird.f32 %v1075
  %vm1082 = vmor %vm1080, %vm1081
  %v1083 = vsel %vm1082, %v1075, %v1079
  %v1084 = vand.u32 2147483647, %v1074
  %vm1085 = vcmp.eq.f32.partialorder %v1084, 8.507059e+37
  %v1086 = vand.u32 %v1074, 2147483648
  %v1087 = vor.u32 1.1754944e-38, %v1086
  %v1088 = vsel %vm1085, %v1087, %v1083
  %v1089 = vmul.f32 1.0, %v1088
  %v1090 = vadd.f32 %v1001, %v1048
  %v1091 = vxor.u32 %v1090, 2147483648
  %v1092 = vmul.f32 %v1091, 1.442695
  %v1093 = vpow.pop %v1092
  %v1094 = vadd.f32 %v1093, 1.0
  %v1095 = vrcp.pop %v1094
  %v1096 = vmul.f32 %v1094, %v1095
  %v1097 = vsub.f32 1.0, %v1096
  %v1098 = vmul.f32 %v1095, %v1097
  %v1099 = vadd.f32 %v1095, %v1098
  %vm1100 = vweird.f32 %v1094
  %vm1101 = vweird.f32 %v1095
  %vm1102 = vmor %vm1100, %vm1101
  %v1103 = vsel %vm1102, %v1095, %v1099
  %v1104 = vand.u32 2147483647, %v1094
  %vm1105 = vcmp.eq.f32.partialorder %v1104, 8.507059e+37
  %v1106 = vand.u32 %v1094, 2147483648
  %v1107 = vor.u32 1.1754944e-38, %v1106
  %v1108 = vsel %vm1105, %v1107, %v1103
  %v1109 = vmul.f32 1.0, %v1108
  %v1110 = vmul.f32 %v1089, %v1068
  %v1111 = vadd.f32 %v1002, %v1110
  %v1112 = vtanh.pop %v1111
  %v1113 = vsub.f32 1.0, %v1109
  %v1114 = vmul.f32 %v1113, %v1112
  %v1115 = vmul.f32 %v1109, 0.0
  %v1116 = vadd.f32 %v1114, %v1115
  %s1117 = scalar_lea.vmem [#allocation2], 24
  %v1118 = vld [vmem:[%s1117] sm:$0xff]
  %v1119 = vld [vmem:[%s1117 + $0x8] sm:$0xff]
  %v1120 = vld [vmem:[%s1117 + $0x10] sm:$0xff]
  %1121 = vmatpush.msra.mxu0 %v996
  %1122 = vmatpush.msra.mxu0 %v993
  %1123 = vmatpush.msra.mxu0 %v990
  %1124 = vmatpush.msra.mxu0 %v987
  %1125 = vmatpush.msra.mxu0 %v984
  %1126 = vmatpush.msra.mxu0 %v981
  %1127 = vmatpush.msra.mxu0 %v978
  %1128 = vmatpush.msra.mxu0 %v975
  %1129 = vmatpush.msra.mxu0 %v972
  %1130 = vmatpush.msra.mxu0 %v969
  %1131 = vmatpush.msra.mxu0 %v966
  %1132 = vmatpush.msra.mxu0 %v963
  %1133 = vmatpush.msra.mxu0 %v960
  %1134 = vmatpush.msra.mxu0 %v957
  %1135 = vmatpush.msra.mxu0 %v954
  %1136 = vmatpush.msra.mxu0 %v951
  %1137 = vmatmul.f32.gmra.mxu0 %v1116
  %v1138 = vpop.f32.mrf.mxu0
  %v1139 = vadd.f32 %v1004, %v1138
  %1140 = vdwg.mxu0
  %1141 = vmatpush.msra.mxu0 %v997
  %1142 = vmatpush.msra.mxu0 %v994
  %1143 = vmatpush.msra.mxu0 %v991
  %1144 = vmatpush.msra.mxu0 %v988
  %1145 = vmatpush.msra.mxu0 %v985
  %1146 = vmatpush.msra.mxu0 %v982
  %1147 = vmatpush.msra.mxu0 %v979
  %1148 = vmatpush.msra.mxu0 %v976
  %1149 = vmatpush.msra.mxu0 %v973
  %1150 = vmatpush.msra.mxu0 %v970
  %1151 = vmatpush.msra.mxu0 %v967
  %1152 = vmatpush.msra.mxu0 %v964
  %1153 = vmatpush.msra.mxu0 %v961
  %1154 = vmatpush.msra.mxu0 %v958
  %1155 = vmatpush.msra.mxu0 %v955
  %1156 = vmatpush.msra.mxu0 %v952
  %1157 = vmatmul.f32.gmra.mxu0 %v1116
  %v1158 = vpop.f32.mrf.mxu0
  %v1159 = vadd.f32 %v1005, %v1158
  %1160 = vdwg.mxu0
  %1161 = vmatpush.msra.mxu0 %v998
  %1162 = vmatpush.msra.mxu0 %v995
  %1163 = vmatpush.msra.mxu0 %v992
  %1164 = vmatpush.msra.mxu0 %v989
  %1165 = vmatpush.msra.mxu0 %v986
  %1166 = vmatpush.msra.mxu0 %v983
  %1167 = vmatpush.msra.mxu0 %v980
  %1168 = vmatpush.msra.mxu0 %v977
  %1169 = vmatpush.msra.mxu0 %v974
  %1170 = vmatpush.msra.mxu0 %v971
  %1171 = vmatpush.msra.mxu0 %v968
  %1172 = vmatpush.msra.mxu0 %v965
  %1173 = vmatpush.msra.mxu0 %v962
  %1174 = vmatpush.msra.mxu0 %v959
  %1175 = vmatpush.msra.mxu0 %v956
  %1176 = vmatpush.msra.mxu0 %v953
  %1177 = vmatmul.f32.gmra.mxu0 %v1116
  %v1178 = vpop.f32.mrf.mxu0
  %v1179 = vadd.f32 %v1006, %v1178
  %1180 = vdwg.mxu0
  %v1181 = vadd.f32 %v1118, %v1139
  %v1182 = vxor.u32 %v1181, 2147483648
  %v1183 = vmul.f32 %v1182, 1.442695
  %v1184 = vpow.pop %v1183
  %v1185 = vadd.f32 %v1184, 1.0
  %v1186 = vrcp.pop %v1185
  %v1187 = vmul.f32 %v1185, %v1186
  %v1188 = vsub.f32 1.0, %v1187
  %v1189 = vmul.f32 %v1186, %v1188
  %v1190 = vadd.f32 %v1186, %v1189
  %vm1191 = vweird.f32 %v1185
  %vm1192 = vweird.f32 %v1186
  %vm1193 = vmor %vm1191, %vm1192
  %v1194 = vsel %vm1193, %v1186, %v1190
  %v1195 = vand.u32 2147483647, %v1185
  %vm1196 = vcmp.eq.f32.partialorder %v1195, 8.507059e+37
  %v1197 = vand.u32 %v1185, 2147483648
  %v1198 = vor.u32 1.1754944e-38, %v1197
  %v1199 = vsel %vm1196, %v1198, %v1194
  %v1200 = vmul.f32 1.0, %v1199
  %v1201 = vadd.f32 %v1119, %v1159
  %v1202 = vxor.u32 %v1201, 2147483648
  %v1203 = vmul.f32 %v1202, 1.442695
  %v1204 = vpow.pop %v1203
  %v1205 = vadd.f32 %v1204, 1.0
  %v1206 = vrcp.pop %v1205
  %v1207 = vmul.f32 %v1205, %v1206
  %v1208 = vsub.f32 1.0, %v1207
  %v1209 = vmul.f32 %v1206, %v1208
  %v1210 = vadd.f32 %v1206, %v1209
  %vm1211 = vweird.f32 %v1205
  %vm1212 = vweird.f32 %v1206
  %vm1213 = vmor %vm1211, %vm1212
  %v1214 = vsel %vm1213, %v1206, %v1210
  %v1215 = vand.u32 2147483647, %v1205
  %vm1216 = vcmp.eq.f32.partialorder %v1215, 8.507059e+37
  %v1217 = vand.u32 %v1205, 2147483648
  %v1218 = vor.u32 1.1754944e-38, %v1217
  %v1219 = vsel %vm1216, %v1218, %v1214
  %v1220 = vmul.f32 1.0, %v1219
  %v1221 = vmul.f32 %v1200, %v1179
  %v1222 = vadd.f32 %v1120, %v1221
  %v1223 = vtanh.pop %v1222
  %v1224 = vsub.f32 1.0, %v1220
  %v1225 = vmul.f32 %v1224, %v1223
  %v1226 = vmul.f32 %v1220, %v1116
  %v1227 = vadd.f32 %v1225, %v1226
  %v1228 = vmax.f32 %v1116, %v1227
  %v1229 = vld [vmem:[%s7] sm:$0xff]
  %v1230 = vld [vmem:[%s7 + $0x8] sm:$0xff]
  %v1231 = vld [vmem:[%s7 + $0x10] sm:$0xff]
  %v1232 = vld [vmem:[%s7 + $0x18] sm:$0xff]
  %v1233 = vld [vmem:[%s7 + $0x20] sm:$0xff]
  %v1234 = vld [vmem:[%s7 + $0x28] sm:$0xff]
  %v1235 = vld [vmem:[%s7 + $0x30] sm:$0xff]
  %v1236 = vld [vmem:[%s7 + $0x38] sm:$0xff]
  %v1237 = vld [vmem:[%s7 + $0x40] sm:$0xff]
  %v1238 = vld [vmem:[%s7 + $0x48] sm:$0xff]
  %v1239 = vld [vmem:[%s7 + $0x50] sm:$0xff]
  %v1240 = vld [vmem:[%s7 + $0x58] sm:$0xff]
  %v1241 = vld [vmem:[%s7 + $0x60] sm:$0xff]
  %v1242 = vld [vmem:[%s7 + $0x68] sm:$0xff]
  %v1243 = vld [vmem:[%s7 + $0x70] sm:$0xff]
  %v1244 = vld [vmem:[%s7 + $0x78] sm:$0xff]
  %v1245 = vld [vmem:[%s8] sm:$0x1]
  %v1247 = vperm.slane %v1245, 0
  %1249 = vmatpush.msra.mxu0 %v1244
  %1250 = vmatpush.msra.mxu0 %v1243
  %1251 = vmatpush.msra.mxu0 %v1242
  %1252 = vmatpush.msra.mxu0 %v1241
  %1253 = vmatpush.msra.mxu0 %v1240
  %1254 = vmatpush.msra.mxu0 %v1239
  %1255 = vmatpush.msra.mxu0 %v1238
  %1256 = vmatpush.msra.mxu0 %v1237
  %1257 = vmatpush.msra.mxu0 %v1236
  %1258 = vmatpush.msra.mxu0 %v1235
  %1259 = vmatpush.msra.mxu0 %v1234
  %1260 = vmatpush.msra.mxu0 %v1233
  %1261 = vmatpush.msra.mxu0 %v1232
  %1262 = vmatpush.msra.mxu0 %v1231
  %1263 = vmatpush.msra.mxu0 %v1230
  %1264 = vmatpush.msra.mxu0 %v1229
  %1265 = vmatmul.f32.gmra.mxu0 %v1228
  %v1266 = vpop.f32.mrf.mxu0
  %v1267 = vadd.f32 %v1247, %v1266
  %1268 = vdwg.mxu0
  %1269 = vst [vmem:[%s9] sm:$0xff] %v1267
  // Predicated region
  $region38: #{cnn_gru_forward.1} parent=0 // pred_check
    _
  $region39: #{cnn_gru_forward.1} parent=0 // pred_check_branch
    %1271 = sbr.rel (0) target = $region41
  $region40: #{cnn_gru_forward.1} parent=0 // pred_region
    _
  $region41: #{cnn_gru_forward.1} parent=0 // pred_fallthru
    _
  // Predicated region
  $region42: #{cnn_gru_forward.1} parent=0 // pred_check
    _
  $region43: #{cnn_gru_forward.1} parent=0 // pred_check_branch
    %1273 = sbr.rel (0) target = $region45
  $region44: #{cnn_gru_forward.1} parent=0 // pred_region
    _
  $region45: #{cnn_gru_forward.1} parent=0 // pred_fallthru
    _

</llo_original>
